<compile_context>
chip_gen: v7x
topology: tpu7x:2x2x1
jax: 0.10.0
libtpu: 0.0.40
codegen_flags: <defaults>
</compile_context>

<pallas_src>
import numpy as np
import jax
import jax.numpy as jnp
from jax import lax
from jax.experimental import pallas as pl
from jax.experimental.pallas import tpu as pltpu


# ---------------------------------------------------------------------------
# Matmul-precision probe (defensive): use HIGHEST (exact f32 on the MXU) when
# the Mosaic dot_general lowering accepts it, otherwise fall back to default.
# ---------------------------------------------------------------------------
_PRECISION_CACHE = []


def _probe_matmul_precision():
    for prec in (lax.Precision.HIGHEST, None):
        try:
            def k(a_ref, b_ref, o_ref, *, _prec=prec):
                o_ref[...] = lax.dot_general(
                    a_ref[...], b_ref[...],
                    dimension_numbers=(((1,), (0,)), ((), ())),
                    preferred_element_type=jnp.float32,
                    precision=_prec)

            a = jnp.full((8, 128), 1.0, jnp.float32)
            b = jnp.full((128, 128), 1.0, jnp.float32)
            out = pl.pallas_call(
                k, out_shape=jax.ShapeDtypeStruct((8, 128), jnp.float32))(a, b)
            jax.block_until_ready(out)
            return prec
        except Exception:
            continue
    return None


def _matmul_precision():
    if not _PRECISION_CACHE:
        _PRECISION_CACHE.append(_probe_matmul_precision())
    return _PRECISION_CACHE[0]


# ---------------------------------------------------------------------------
# Banded moving-average matrices (replicate padding folded into edge columns)
# ---------------------------------------------------------------------------
def _build_avg_matrices(kernel_sizes, L):
    """Stack of (L, L) f32 matrices A_i with (A_i @ x)[t] = moving_avg_ks(x)[t]."""
    rows = np.arange(L)
    mats = np.zeros((len(kernel_sizes), L, L), dtype=np.float32)
    for i, ks in enumerate(kernel_sizes):
        pad = ks // 2
        left, right = (pad - 1, pad) if ks % 2 == 0 else (pad, pad)
        A = np.zeros((L, L), dtype=np.float64)
        for s in range(-left, right + 1):
            cols = np.clip(rows + s, 0, L - 1)   # replicate padding == index clamp
            A[rows, cols] += 1.0                 # (row, col) unique within one shift
        mats[i] = (A / float(ks)).astype(np.float32)
    return jnp.asarray(mats)


# ---------------------------------------------------------------------------
# Kernel
# ---------------------------------------------------------------------------
def _make_decomp_kernel(n_levels, TB, precision):
    def _avg(A, res):
        # (L, L) @ (L, Ct) on the MXU, f32 accumulation.
        return lax.dot_general(
            A, res, dimension_numbers=(((1,), (0,)), ((), ())),
            preferred_element_type=jnp.float32, precision=precision)

    def kernel(a_ref, x_ref, *out_refs):
        mean_refs = out_refs[:n_levels]
        res_ref = out_refs[n_levels]

        def process(bb):
            res = x_ref[bb].astype(jnp.float32)            # (L, Ct)
            for i in range(n_levels):
                mean = _avg(a_ref[i], res)                 # MXU
                mean_refs[i][bb] = mean.astype(mean_refs[i].dtype)
                res = res - mean                           # VPU
            res_ref[bb] = res.astype(res_ref.dtype)

        if TB == 1:
            process(0)
        else:
            # fori_loop (not a Python unroll) keeps vreg live ranges bounded.
            def body(bb, carry):
                process(bb)
                return carry
            lax.fori_loop(0, TB, body, 0)

    return kernel


# ---------------------------------------------------------------------------
# Tiling / VMEM heuristics
# ---------------------------------------------------------------------------
def _vmem_budget_bytes():
    try:
        info = pltpu.get_tpu_info()
        cap = getattr(info, "vmem_capacity_bytes", None)
        if cap:
            # ~60% of physical VMEM: ~76 MiB on v5e/v6e (128 MiB), ~38 MiB on v7x (64 MiB)
            return int(cap * 0.6)
    except Exception:
        pass
    return 38 * 1024 * 1024   # conservative default that fits v7x


def _vmem_estimate(n_levels, tb, L, ct, itemsize):
    mats = 2 * n_levels * L * L * 4                        # resident A stack
    io = (n_levels + 2) * 2 * tb * L * ct * itemsize       # double-buffered blocks
    temps = 8 * L * ct * 4                                 # f32 temporaries
    return mats + io + temps


def _pick_channel_tile(C, L, itemsize, n_levels, budget):
    if C % 128 == 0:
        cands = [C] + [c for c in (1024, 512, 384, 256, 128) if c < C and C % c == 0]
    else:
        cands = [C]   # non-lane-aligned C: take the full channel dim
    for c in cands:
        if _vmem_estimate(n_levels, 1, L, c, itemsize) <= budget:
            return c
    raise ValueError(
        f"series_decomp_pallas: L={L}, C={C}, n_levels={n_levels} does not fit the "
        f"VMEM budget ({budget} B) with resident averaging matrices. "
        "TODO(synk): prefix-sum fallback for very long sequences.")


def _pick_batch_tile(B, L, ct, n_c_tiles, itemsize, n_levels, budget):
    # Fold batch rows into the block to amortize ~0.35us/grid-step overhead,
    # but keep >= 2 grid steps so v7x's two TensorCores both get work.
    tb = 1
    target_block = 4 * 1024 * 1024
    while (B % (tb * 2) == 0
           and (B // (tb * 2)) * n_c_tiles >= 2
           and (tb * 2) * L * ct * itemsize <= target_block
           and _vmem_estimate(n_levels, tb * 2, L, ct, itemsize) <= budget):
        tb *= 2
    return tb


# ---------------------------------------------------------------------------
# Public wrapper
# ---------------------------------------------------------------------------
def series_decomp_pallas(x, kernel_size_list, *, channel_tile=None, batch_tile=None):
    """JAX/Pallas equivalent of MSRNet series_decomp.forward.

    Args:
      x: (B, L, C) array (batch, time, channels).
      kernel_size_list: static list of ints (moving-average window sizes).
      channel_tile / batch_tile: optional block-shape overrides.

    Returns:
      (moving_means, res): list of n (B, L, C) arrays and the final residual.
    """
    B, L, C = x.shape
    kernel_sizes = tuple(int(k) for k in kernel_size_list)
    n = len(kernel_sizes)
    itemsize = jnp.dtype(x.dtype).itemsize

    budget = _vmem_budget_bytes()
    ct = channel_tile if channel_tile is not None else _pick_channel_tile(C, L, itemsize, n, budget)
    assert C % ct == 0 and (ct == C or ct % 128 == 0), \
        "channel tile must divide C and be lane-dense (multiple of 128 or full C)"
    n_c_tiles = C // ct

    tb = batch_tile if batch_tile is not None else _pick_batch_tile(
        B, L, ct, n_c_tiles, itemsize, n, budget)
    assert B % tb == 0, "batch tile must divide B"

    # v7x megacore nudge: avoid a 1-step grid when channels can still be split
    # into lane-dense halves.
    if channel_tile is None and (B // tb) * n_c_tiles < 2 and C % 256 == 0 and ct == C:
        ct = C // 2
        n_c_tiles = 2

    grid = (B // tb, n_c_tiles)

    est = _vmem_estimate(n, tb, L, ct, itemsize)
    vmem_limit = int(min(max(budget, 16 * 1024 * 1024),
                         max(est + 4 * 1024 * 1024, 16 * 1024 * 1024)))

    a_stack = _build_avg_matrices(kernel_sizes, L)          # (n, L, L) f32, resident
    precision = _matmul_precision()
    kernel = _make_decomp_kernel(n, tb, precision)

    a_spec = pl.BlockSpec((n, L, L), lambda b, c: (0, 0, 0))

    def xo_spec():
        return pl.BlockSpec((tb, L, ct), lambda b, c: (b, 0, c))

    out_shapes = tuple(jax.ShapeDtypeStruct((B, L, C), x.dtype) for _ in range(n + 1))

    outs = pl.pallas_call(
        kernel,
        out_shape=out_shapes,
        grid_spec=pltpu.PrefetchScalarGridSpec(
            num_scalar_prefetch=0,
            grid=grid,
            in_specs=[a_spec, xo_spec()],
            out_specs=tuple(xo_spec() for _ in range(n + 1)),
        ),
        compiler_params=pltpu.CompilerParams(
            dimension_semantics=("parallel", "parallel"),
            vmem_limit_bytes=vmem_limit,
        ),
    )(a_stack, x)

    return list(outs[:n]), outs[n]


# ---------------------------------------------------------------------------
# Pure-JAX reference (mirrors the PyTorch forward exactly) for verification.
# ---------------------------------------------------------------------------
def _moving_avg_ref(x, ks):
    pad = ks // 2
    if ks % 2 == 0:
        left, right = pad - 1, pad
    else:
        left, right = pad, pad
    front = jnp.repeat(x[:, 0:1, :], left, axis=1)
    end = jnp.repeat(x[:, -1:, :], right, axis=1)
    xp = jnp.concatenate([front, x, end], axis=1)
    L = x.shape[1]
    windows = jnp.stack([xp[:, j:j + L, :] for j in range(ks)], axis=0)
    return windows.mean(axis=0)


def _series_decomp_ref(x, kernel_size_list):
    res = x
    means = []
    for ks in kernel_size_list:
        m = _moving_avg_ref(res, ks)
        means.append(m)
        res = res - m
    return means, res


def _check(x, ks_list, **kwargs):
    means, res = series_decomp_pallas(x, ks_list, **kwargs)
    res = jax.block_until_ready(res)
    means = [jax.block_until_ready(m) for m in means]
    ref_means, ref_res = _series_decomp_ref(x, ks_list)
    # f32-exact when HIGHEST matmul precision is available; looser otherwise.
    tol = 1e-5 if _matmul_precision() == lax.Precision.HIGHEST else 2e-2
    for m, rm in zip(means, ref_means):
        assert jnp.allclose(m, rm, atol=tol, rtol=tol), "moving mean mismatch"
    assert jnp.allclose(res, ref_res, atol=tol, rtol=tol), "residual mismatch"


if __name__ == "__main__":
    key = jax.random.PRNGKey(0)
    k1, k2 = jax.random.split(key)

    # Test 1: small C < 128 (full-channel block), odd + even kernels, default
    # tiling -> batch on the grid (TB == 1 kernel path).
    x1 = jax.random.normal(k1, (2, 16, 8), dtype=jnp.float32)
    _check(x1, [3, 4, 7])

    # Test 2: lane-dense channel tiling (2 channel tiles of 128) with batch rows
    # folded into the block (fori_loop path); includes an even window and a
    # window larger than the sequence length.
    x2 = jax.random.normal(k2, (2, 24, 256), dtype=jnp.float32)
    _check(x2, [5, 8, 25], channel_tile=128, batch_tile=2)

    print("KERNEL_OK")
</pallas_src>

<mosaic_0001>
module attributes {stable_mosaic.version = 11 : i64} {
  func.func @k(%arg0: memref<8x128xf32, #tpu.memory_space<vmem>>, %arg1: memref<128x128xf32, #tpu.memory_space<vmem>>, %arg2: memref<8x128xf32, #tpu.memory_space<vmem>>) attributes {dimension_semantics = [], scalar_prefetch = 0 : i64, scratch_operands = 0 : i64, tpu.core_type = #tpu.core_type<tc>} {
    %c0 = arith.constant 0 : index
    %c0_0 = arith.constant 0 : index
    %0 = vector.load %arg0[%c0, %c0_0] : memref<8x128xf32, #tpu.memory_space<vmem>>, vector<8x128xf32>
    %c0_1 = arith.constant 0 : index
    %c0_2 = arith.constant 0 : index
    %1 = vector.load %arg1[%c0_1, %c0_2] : memref<128x128xf32, #tpu.memory_space<vmem>>, vector<128x128xf32>
    %cst = arith.constant dense<0.000000e+00> : vector<8x128xf32>
    %2 = tpu.matmul %0, %1, %cst {dimension_numbers = #tpu.dot_dimension_numbers<[1], [0], [0], [1], [0, 0, 1, 1], [], []>, precision = #tpu.contract_precision<fp32>} : vector<8x128xf32>, vector<128x128xf32>, vector<8x128xf32> -> vector<8x128xf32>
    %c0_3 = arith.constant 0 : index
    %c0_4 = arith.constant 0 : index
    %3 = vector.load %arg2[%c0_3, %c0_4] : memref<8x128xf32, #tpu.memory_space<vmem>>, vector<8x128xf32>
    tpu.vector_store %arg2[%c0_3, %c0_4], %2 {strides = array<i32>} : memref<8x128xf32, #tpu.memory_space<vmem>>, vector<8x128xf32>,
    return
  }
}

module attributes {stable_mosaic.version = 11 : i64} {
  func.func @k(%arg0: memref<8x128xf32, #tpu.memory_space<vmem>>, %arg1: memref<128x128xf32, #tpu.memory_space<vmem>>, %arg2: memref<8x128xf32, #tpu.memory_space<vmem>>) attributes {dimension_semantics = [], scalar_prefetch = 0 : i64, scratch_operands = 0 : i64, tpu.core_type = #tpu.core_type<tc>} {
    %c0 = arith.constant 0 : index
    %c0_0 = arith.constant 0 : index
    %0 = vector.load %arg0[%c0, %c0_0] : memref<8x128xf32, #tpu.memory_space<vmem>>, vector<8x128xf32>
    %c0_1 = arith.constant 0 : index
    %c0_2 = arith.constant 0 : index
    %1 = vector.load %arg1[%c0_1, %c0_2] : memref<128x128xf32, #tpu.memory_space<vmem>>, vector<128x128xf32>
    %cst = arith.constant dense<0.000000e+00> : vector<8x128xf32>
    %2 = tpu.matmul %0, %1, %cst {dimension_numbers = #tpu.dot_dimension_numbers<[1], [0], [0], [1], [0, 0, 1, 1], [], []>} : vector<8x128xf32>, vector<128x128xf32>, vector<8x128xf32> -> vector<8x128xf32>
    %c0_3 = arith.constant 0 : index
    %c0_4 = arith.constant 0 : index
    %3 = vector.load %arg2[%c0_3, %c0_4] : memref<8x128xf32, #tpu.memory_space<vmem>>, vector<8x128xf32>
    tpu.vector_store %arg2[%c0_3, %c0_4], %2 {strides = array<i32>} : memref<8x128xf32, #tpu.memory_space<vmem>>, vector<8x128xf32>,
    return
  }
}

module attributes {stable_mosaic.version = 11 : i64} {
  func.func @kernel(%arg0: i32, %arg1: i32, %arg2: memref<3x16x16xf32, #tpu.memory_space<vmem>>, %arg3: memref<1x16x8xf32, #tpu.memory_space<vmem>>, %arg4: memref<1x16x8xf32, #tpu.memory_space<vmem>>, %arg5: memref<1x16x8xf32, #tpu.memory_space<vmem>>, %arg6: memref<1x16x8xf32, #tpu.memory_space<vmem>>, %arg7: memref<1x16x8xf32, #tpu.memory_space<vmem>>) attributes {dimension_semantics = [#tpu.dimension_semantics<parallel>, #tpu.dimension_semantics<parallel>], iteration_bounds = array<i64: 2, 1>, scalar_prefetch = 0 : i64, scratch_operands = 0 : i64, tpu.core_type = #tpu.core_type<tc>, window_params = [{pipeline_mode = #tpu.pipeline_mode<synchronous>, transform_indices = @transform_0, window_bounds = array<i64: 3, 16, 16>}, {transform_indices = @transform_1, window_bounds = array<i64: 1, 16, 8>}, {transform_indices = @transform_2, window_bounds = array<i64: 1, 16, 8>}, {transform_indices = @transform_3, window_bounds = array<i64: 1, 16, 8>}, {transform_indices = @transform_4, window_bounds = array<i64: 1, 16, 8>}, {transform_indices = @transform_5, window_bounds = array<i64: 1, 16, 8>}]} {
    %c0 = arith.constant 0 : index
    %c0_0 = arith.constant 0 : index
    %c0_1 = arith.constant 0 : index
    %0 = vector.load %arg3[%c0, %c0_0, %c0_1] : memref<1x16x8xf32, #tpu.memory_space<vmem>>, vector<1x16x8xf32>
    %1 = vector.shape_cast %0 : vector<1x16x8xf32> to vector<16x8xf32>
    %c0_2 = arith.constant 0 : index
    %c0_3 = arith.constant 0 : index
    %c0_4 = arith.constant 0 : index
    %2 = vector.load %arg2[%c0_2, %c0_3, %c0_4] : memref<3x16x16xf32, #tpu.memory_space<vmem>>, vector<1x16x16xf32>
    %3 = vector.shape_cast %2 : vector<1x16x16xf32> to vector<16x16xf32>
    %cst = arith.constant dense<0.000000e+00> : vector<16x8xf32>
    %4 = tpu.matmul %3, %1, %cst {dimension_numbers = #tpu.dot_dimension_numbers<[1], [0], [0], [1], [0, 0, 1, 1], [], []>} : vector<16x16xf32>, vector<16x8xf32>, vector<16x8xf32> -> vector<16x8xf32>
    %c0_5 = arith.constant 0 : index
    %c0_6 = arith.constant 0 : index
    %c0_7 = arith.constant 0 : index
    %5 = vector.load %arg4[%c0_5, %c0_6, %c0_7] : memref<1x16x8xf32, #tpu.memory_space<vmem>>, vector<1x16x8xf32>
    %6 = vector.shape_cast %5 : vector<1x16x8xf32> to vector<16x8xf32>
    %7 = vector.shape_cast %4 : vector<16x8xf32> to vector<1x16x8xf32>
    tpu.vector_store %arg4[%c0_5, %c0_6, %c0_7], %7 {strides = array<i32>} : memref<1x16x8xf32, #tpu.memory_space<vmem>>, vector<1x16x8xf32>,
    %8 = arith.subf %1, %4 : vector<16x8xf32>
    %c1 = arith.constant 1 : index
    %c0_8 = arith.constant 0 : index
    %c0_9 = arith.constant 0 : index
    %9 = vector.load %arg2[%c1, %c0_8, %c0_9] : memref<3x16x16xf32, #tpu.memory_space<vmem>>, vector<1x16x16xf32>
    %10 = vector.shape_cast %9 : vector<1x16x16xf32> to vector<16x16xf32>
    %cst_10 = arith.constant dense<0.000000e+00> : vector<16x8xf32>
    %11 = tpu.matmul %10, %8, %cst_10 {dimension_numbers = #tpu.dot_dimension_numbers<[1], [0], [0], [1], [0, 0, 1, 1], [], []>} : vector<16x16xf32>, vector<16x8xf32>, vector<16x8xf32> -> vector<16x8xf32>
    %c0_11 = arith.constant 0 : index
    %c0_12 = arith.constant 0 : index
    %c0_13 = arith.constant 0 : index
    %12 = vector.load %arg5[%c0_11, %c0_12, %c0_13] : memref<1x16x8xf32, #tpu.memory_space<vmem>>, vector<1x16x8xf32>
    %13 = vector.shape_cast %12 : vector<1x16x8xf32> to vector<16x8xf32>
    %14 = vector.shape_cast %11 : vector<16x8xf32> to vector<1x16x8xf32>
    tpu.vector_store %arg5[%c0_11, %c0_12, %c0_13], %14 {strides = array<i32>} : memref<1x16x8xf32, #tpu.memory_space<vmem>>, vector<1x16x8xf32>,
    %15 = arith.subf %8, %11 : vector<16x8xf32>
    %c2 = arith.constant 2 : index
    %c0_14 = arith.constant 0 : index
    %c0_15 = arith.constant 0 : index
    %16 = vector.load %arg2[%c2, %c0_14, %c0_15] : memref<3x16x16xf32, #tpu.memory_space<vmem>>, vector<1x16x16xf32>
    %17 = vector.shape_cast %16 : vector<1x16x16xf32> to vector<16x16xf32>
    %cst_16 = arith.constant dense<0.000000e+00> : vector<16x8xf32>
    %18 = tpu.matmul %17, %15, %cst_16 {dimension_numbers = #tpu.dot_dimension_numbers<[1], [0], [0], [1], [0, 0, 1, 1], [], []>} : vector<16x16xf32>, vector<16x8xf32>, vector<16x8xf32> -> vector<16x8xf32>
    %c0_17 = arith.constant 0 : index
    %c0_18 = arith.constant 0 : index
    %c0_19 = arith.constant 0 : index
    %19 = vector.load %arg6[%c0_17, %c0_18, %c0_19] : memref<1x16x8xf32, #tpu.memory_space<vmem>>, vector<1x16x8xf32>
    %20 = vector.shape_cast %19 : vector<1x16x8xf32> to vector<16x8xf32>
    %21 = vector.shape_cast %18 : vector<16x8xf32> to vector<1x16x8xf32>
    tpu.vector_store %arg6[%c0_17, %c0_18, %c0_19], %21 {strides = array<i32>} : memref<1x16x8xf32, #tpu.memory_space<vmem>>, vector<1x16x8xf32>,
    %22 = arith.subf %15, %18 : vector<16x8xf32>
    %c0_20 = arith.constant 0 : index
    %c0_21 = arith.constant 0 : index
    %c0_22 = arith.constant 0 : index
    %23 = vector.load %arg7[%c0_20, %c0_21, %c0_22] : memref<1x16x8xf32, #tpu.memory_space<vmem>>, vector<1x16x8xf32>
    %24 = vector.shape_cast %23 : vector<1x16x8xf32> to vector<16x8xf32>
    %25 = vector.shape_cast %22 : vector<16x8xf32> to vector<1x16x8xf32>
    tpu.vector_store %arg7[%c0_20, %c0_21, %c0_22], %25 {strides = array<i32>} : memref<1x16x8xf32, #tpu.memory_space<vmem>>, vector<1x16x8xf32>,
    return
  }
  func.func @transform_0(%arg0: i32, %arg1: i32) -> (i32, i32, i32) {
    %c0_i32 = arith.constant 0 : i32
    %c0_i32_0 = arith.constant 0 : i32
    %c0_i32_1 = arith.constant 0 : i32
    %c0_i32_2 = arith.constant 0 : i32
    return %c0_i32, %c0_i32_0, %c0_i32_1 : i32, i32, i32
  }
  func.func @transform_1(%arg0: i32, %arg1: i32) -> (i32, i32, i32) {
    %c0_i32 = arith.constant 0 : i32
    %c0_i32_0 = arith.constant 0 : i32
    return %arg0, %c0_i32, %arg1 : i32, i32, i32
  }
  func.func @transform_2(%arg0: i32, %arg1: i32) -> (i32, i32, i32) {
    %c0_i32 = arith.constant 0 : i32
    %c0_i32_0 = arith.constant 0 : i32
    return %arg0, %c0_i32, %arg1 : i32, i32, i32
  }
  func.func @transform_3(%arg0: i32, %arg1: i32) -> (i32, i32, i32) {
    %c0_i32 = arith.constant 0 : i32
    %c0_i32_0 = arith.constant 0 : i32
    return %arg0, %c0_i32, %arg1 : i32, i32, i32
  }
  func.func @transform_4(%arg0: i32, %arg1: i32) -> (i32, i32, i32) {
    %c0_i32 = arith.constant 0 : i32
    %c0_i32_0 = arith.constant 0 : i32
    return %arg0, %c0_i32, %arg1 : i32, i32, i32
  }
  func.func @transform_5(%arg0: i32, %arg1: i32) -> (i32, i32, i32) {
    %c0_i32 = arith.constant 0 : i32
    %c0_i32_0 = arith.constant 0 : i32
    return %arg0, %c0_i32, %arg1 : i32, i32, i32
  }
}

</mosaic_0001>

<llo_original>
// kernel: tpu_custom_call.1
$region0: #{tpu_custom_call.1}
  #allocation0 [shape = 'u32[]', space=smem, size = 0x4, offset = 0x4, fixed_abs, tag = 'smem constant byte address 0x4 - core index']
  #allocation1 [shape = 'u32[144,128]{1,0:T(1,128)}', space=vmem, size = 0x12000, scoped, tag = 'internal scratch']
  %s0 = inlined_call_operand.hbm [shape: f32[8,128], index: 0, kind: input, shape index: {}]
  %s1 = inlined_call_operand.hbm [shape: f32[128,128], index: 1, kind: input, shape index: {}]
  %s2 = inlined_call_operand.hbm [shape: f32[8,128], index: 2, kind: output, shape index: {}]
  %s3 = sld [smem:[#allocation0]]
  $region26: #{tpu_custom_call.1} parent=0
    _
  %s5 = ssub.s32 1, %s3
  %s6 = scalar_select 0, %s5, %s3
  $region1: #{tpu_custom_call.1} parent=0
    #allocation2 [shape = 'u8[4096]{0}', space=vmem, size = 0x1000, scoped, tag = 'input window, operand 0, single buffered']
    #allocation3 [shape = 's32[1]{0}', space=sflag, size = 0x4, scoped, tag = 'scoped memory for tpu_custom_call.1']
    #allocation4 [shape = 's32[1]{0}', space=sflag, size = 0x4, scoped, tag = 'scoped memory for tpu_custom_call.1']
    #allocation5 [shape = 'u8[65536]{0}', space=vmem, size = 0x10000, scoped, tag = 'input window, operand 1, single buffered']
    #allocation6 [shape = 's32[1]{0}', space=sflag, size = 0x4, scoped, tag = 'scoped memory for tpu_custom_call.1']
    #allocation7 [shape = 'u8[4096]{0}', space=vmem, size = 0x1000, scoped, tag = 'output window, operand 0, single buffered']
    %7 = vsyncpa [#allocation3], 0
    %8 = vsyncpa [#allocation6], 0
    %9 = vsyncpa [#allocation4], 0
    // Predicated region
    $region2: #{tpu_custom_call.1} parent=1 // pred_check
      _
    $region3: #{tpu_custom_call.1} parent=1 // pred_check_branch
      %11 = sbr.rel (0) target = $region5
    $region4: #{tpu_custom_call.1} parent=1 // pred_region
      %s13 = ssub.s32 128, 128
      %14 = vsyncadd [#allocation3], %s13
      %s16 = sshll.u32 [#allocation2], 4
      %s17 = int_to_ptr.vmem [resolvable:$true] %s16
      %19 = dma.hbm_to_vmem [thread:$0]  %s0, 128, %s17, [#allocation3]
    $region5: #{tpu_custom_call.1} parent=1 // pred_fallthru
      _
    // Predicated region
    $region6: #{tpu_custom_call.1} parent=1 // pred_check
      _
    $region7: #{tpu_custom_call.1} parent=1 // pred_check_branch
      %21 = sbr.rel (0) target = $region9
    $region8: #{tpu_custom_call.1} parent=1 // pred_region
      %s23 = ssub.s32 2048, 2048
      %24 = vsyncadd [#allocation6], %s23
      %s25 = sshll.u32 [#allocation5], 4
      %s26 = int_to_ptr.vmem [resolvable:$true] %s25
      %31 = dma.hbm_to_vmem [thread:$0]  %s1, 2048, %s26, [#allocation6], 128, 128, 8
    $region9: #{tpu_custom_call.1} parent=1 // pred_fallthru
      _
    // Predicated region
    $region10: #{tpu_custom_call.1} parent=1 // pred_check
      _
    $region11: #{tpu_custom_call.1} parent=1 // pred_check_branch
      %33 = sbr.rel (0) target = $region13
    $region12: #{tpu_custom_call.1} parent=1 // pred_region
      %34 = dma.done [#allocation3], 128
    $region13: #{tpu_custom_call.1} parent=1 // pred_fallthru
      _
    // Predicated region
    $region14: #{tpu_custom_call.1} parent=1 // pred_check
      _
    $region15: #{tpu_custom_call.1} parent=1 // pred_check_branch
      %36 = sbr.rel (0) target = $region17
    $region16: #{tpu_custom_call.1} parent=1 // pred_region
      %37 = dma.done [#allocation6], 2048
    $region17: #{tpu_custom_call.1} parent=1 // pred_fallthru
      _
    %v38 = vld [vmem:[#allocation2] sm:$0xff]
    %v39 = vld [vmem:[#allocation5] sm:$0xff]
    %v40 = vld [vmem:[#allocation5 + $0x8] sm:$0xff]
    %v41 = vld [vmem:[#allocation5 + $0x10] sm:$0xff]
    %v42 = vld [vmem:[#allocation5 + $0x18] sm:$0xff]
    %v43 = vld [vmem:[#allocation5 + $0x20] sm:$0xff]
    %v44 = vld [vmem:[#allocation5 + $0x28] sm:$0xff]
    %v45 = vld [vmem:[#allocation5 + $0x30] sm:$0xff]
    %v46 = vld [vmem:[#allocation5 + $0x38] sm:$0xff]
    %v47 = vld [vmem:[#allocation5 + $0x40] sm:$0xff]
    %v48 = vld [vmem:[#allocation5 + $0x48] sm:$0xff]
    %v49 = vld [vmem:[#allocation5 + $0x50] sm:$0xff]
    %v50 = vld [vmem:[#allocation5 + $0x58] sm:$0xff]
    %v51 = vld [vmem:[#allocation5 + $0x60] sm:$0xff]
    %v52 = vld [vmem:[#allocation5 + $0x68] sm:$0xff]
    %v53 = vld [vmem:[#allocation5 + $0x70] sm:$0xff]
    %v54 = vld [vmem:[#allocation5 + $0x78] sm:$0xff]
    %55 = vmatprep.subr.mxu0 0.0
    %v56 = vand.u32 %v39, 4294901760
    %57 = vmatpush1.msra.mxu0 %v56
    %58 = vmatprep.subr.mxu0 0.0
    %v59 = vand.u32 %v40, 4294901760
    %60 = vmatpush1.msra.mxu0 %v59
    %61 = vmatprep.subr.mxu0 0.0
    %v62 = vand.u32 %v41, 4294901760
    %63 = vmatpush1.msra.mxu0 %v62
    %64 = vmatprep.subr.mxu0 0.0
    %v65 = vand.u32 %v42, 4294901760
    %66 = vmatpush1.msra.mxu0 %v65
    %67 = vmatprep.subr.mxu0 0.0
    %v68 = vand.u32 %v43, 4294901760
    %69 = vmatpush1.msra.mxu0 %v68
    %70 = vmatprep.subr.mxu0 0.0
    %v71 = vand.u32 %v44, 4294901760
    %72 = vmatpush1.msra.mxu0 %v71
    %73 = vmatprep.subr.mxu0 0.0
    %v74 = vand.u32 %v45, 4294901760
    %75 = vmatpush1.msra.mxu0 %v74
    %76 = vmatprep.subr.mxu0 0.0
    %v77 = vand.u32 %v46, 4294901760
    %78 = vmatpush1.msra.mxu0 %v77
    %79 = vmatprep.subr.mxu0 0.0
    %v80 = vand.u32 %v47, 4294901760
    %81 = vmatpush1.msra.mxu0 %v80
    %82 = vmatprep.subr.mxu0 0.0
    %v83 = vand.u32 %v48, 4294901760
    %84 = vmatpush1.msra.mxu0 %v83
    %85 = vmatprep.subr.mxu0 0.0
    %v86 = vand.u32 %v49, 4294901760
    %87 = vmatpush1.msra.mxu0 %v86
    %88 = vmatprep.subr.mxu0 0.0
    %v89 = vand.u32 %v50, 4294901760
    %90 = vmatpush1.msra.mxu0 %v89
    %91 = vmatprep.subr.mxu0 0.0
    %v92 = vand.u32 %v51, 4294901760
    %93 = vmatpush1.msra.mxu0 %v92
    %94 = vmatprep.subr.mxu0 0.0
    %v95 = vand.u32 %v52, 4294901760
    %96 = vmatpush1.msra.mxu0 %v95
    %97 = vmatprep.subr.mxu0 0.0
    %v98 = vand.u32 %v53, 4294901760
    %99 = vmatpush1.msra.mxu0 %v98
    %100 = vmatprep.subr.mxu0 0.0
    %v101 = vand.u32 %v54, 4294901760
    %102 = vmatpush1.msra.mxu0 %v101
    %103 = vmatprep.subr.mxu0 0.0
    %104 = vmatpush1.msra.mxu0 0.0
    %105 = vmatprep.subr.mxu0 0.0
    %106 = vmatpush1.msra.mxu0 0.0
    %107 = vmatprep.subr.mxu0 0.0
    %108 = vmatpush1.msra.mxu0 0.0
    %109 = vmatprep.subr.mxu0 0.0
    %110 = vmatpush1.msra.mxu0 0.0
    %111 = vmatprep.subr.mxu0 0.0
    %112 = vmatpush1.msra.mxu0 0.0
    %113 = vmatprep.subr.mxu0 0.0
    %114 = vmatpush1.msra.mxu0 0.0
    %115 = vmatprep.subr.mxu0 0.0
    %116 = vmatpush1.msra.mxu0 0.0
    %117 = vmatprep.subr.mxu0 0.0
    %118 = vmatpush1.msra.mxu0 0.0
    %119 = vmatprep.subr.mxu0 0.0
    %120 = vmatpush1.msra.mxu0 0.0
    %121 = vmatprep.subr.mxu0 0.0
    %122 = vmatpush1.msra.mxu0 0.0
    %123 = vmatprep.subr.mxu0 0.0
    %124 = vmatpush1.msra.mxu0 0.0
    %125 = vmatprep.subr.mxu0 0.0
    %126 = vmatpush1.msra.mxu0 0.0
    %127 = vmatprep.subr.mxu0 0.0
    %128 = vmatpush1.msra.mxu0 0.0
    %129 = vmatprep.subr.mxu0 0.0
    %130 = vmatpush1.msra.mxu0 0.0
    %131 = vmatprep.subr.mxu0 0.0
    %132 = vmatpush1.msra.mxu0 0.0
    %133 = vmatprep.subr.mxu0 0.0
    %134 = vmatpush1.msra.mxu0 0.0
    %135 = vmatprep.mubr.f32.mxu0 0.0
    %v136 = vand.u32 %v38, 4294901760
    %v137 = vsub.f32 %v38, %v136
    %v138 = vand.u32 %v137, 4294901760
    %v139 = vsub.f32 %v137, %v138
    %v140 = vand.u32 %v139, 4294901760
    %141 = vmatmul.mubr.f32.gmra.mrb[0].mxu0 %v140
    %v142 = vpop.f32.mrb[0].mxu0
    %v143 = vadd.f32 0.0, %v142
    %v144 = vpop.f32.mrb[0].mxu0
    %145 = vdwg.mxu0
    %146 = vmatprep.subr.mxu0 0.0
    %v147 = vand.u32 %v39, 4294901760
    %v148 = vsub.f32 %v39, %v147
    %v149 = vand.u32 %v148, 4294901760
    %v150 = vsub.f32 %v148, %v149
    %v151 = vand.u32 %v150, 4294901760
    %152 = vmatpush1.msra.mxu0 %v151
    %153 = vmatprep.subr.mxu0 0.0
    %v154 = vand.u32 %v40, 4294901760
    %v155 = vsub.f32 %v40, %v154
    %v156 = vand.u32 %v155, 4294901760
    %v157 = vsub.f32 %v155, %v156
    %v158 = vand.u32 %v157, 4294901760
    %159 = vmatpush1.msra.mxu0 %v158
    %160 = vmatprep.subr.mxu0 0.0
    %v161 = vand.u32 %v41, 4294901760
    %v162 = vsub.f32 %v41, %v161
    %v163 = vand.u32 %v162, 4294901760
    %v164 = vsub.f32 %v162, %v163
    %v165 = vand.u32 %v164, 4294901760
    %166 = vmatpush1.msra.mxu0 %v165
    %167 = vmatprep.subr.mxu0 0.0
    %v168 = vand.u32 %v42, 4294901760
    %v169 = vsub.f32 %v42, %v168
    %v170 = vand.u32 %v169, 4294901760
    %v171 = vsub.f32 %v169, %v170
    %v172 = vand.u32 %v171, 4294901760
    %173 = vmatpush1.msra.mxu0 %v172
    %174 = vmatprep.subr.mxu0 0.0
    %v175 = vand.u32 %v43, 4294901760
    %v176 = vsub.f32 %v43, %v175
    %v177 = vand.u32 %v176, 4294901760
    %v178 = vsub.f32 %v176, %v177
    %v179 = vand.u32 %v178, 4294901760
    %180 = vmatpush1.msra.mxu0 %v179
    %181 = vmatprep.subr.mxu0 0.0
    %v182 = vand.u32 %v44, 4294901760
    %v183 = vsub.f32 %v44, %v182
    %v184 = vand.u32 %v183, 4294901760
    %v185 = vsub.f32 %v183, %v184
    %v186 = vand.u32 %v185, 4294901760
    %187 = vmatpush1.msra.mxu0 %v186
    %188 = vmatprep.subr.mxu0 0.0
    %v189 = vand.u32 %v45, 4294901760
    %v190 = vsub.f32 %v45, %v189
    %v191 = vand.u32 %v190, 4294901760
    %v192 = vsub.f32 %v190, %v191
    %v193 = vand.u32 %v192, 4294901760
    %194 = vmatpush1.msra.mxu0 %v193
    %195 = vmatprep.subr.mxu0 0.0
    %v196 = vand.u32 %v46, 4294901760
    %v197 = vsub.f32 %v46, %v196
    %v198 = vand.u32 %v197, 4294901760
    %v199 = vsub.f32 %v197, %v198
    %v200 = vand.u32 %v199, 4294901760
    %201 = vmatpush1.msra.mxu0 %v200
    %202 = vmatprep.subr.mxu0 0.0
    %v203 = vand.u32 %v47, 4294901760
    %v204 = vsub.f32 %v47, %v203
    %v205 = vand.u32 %v204, 4294901760
    %v206 = vsub.f32 %v204, %v205
    %v207 = vand.u32 %v206, 4294901760
    %208 = vmatpush1.msra.mxu0 %v207
    %209 = vmatprep.subr.mxu0 0.0
    %v210 = vand.u32 %v48, 4294901760
    %v211 = vsub.f32 %v48, %v210
    %v212 = vand.u32 %v211, 4294901760
    %v213 = vsub.f32 %v211, %v212
    %v214 = vand.u32 %v213, 4294901760
    %215 = vmatpush1.msra.mxu0 %v214
    %216 = vmatprep.subr.mxu0 0.0
    %v217 = vand.u32 %v49, 4294901760
    %v218 = vsub.f32 %v49, %v217
    %v219 = vand.u32 %v218, 4294901760
    %v220 = vsub.f32 %v218, %v219
    %v221 = vand.u32 %v220, 4294901760
    %222 = vmatpush1.msra.mxu0 %v221
    %223 = vmatprep.subr.mxu0 0.0
    %v224 = vand.u32 %v50, 4294901760
    %v225 = vsub.f32 %v50, %v224
    %v226 = vand.u32 %v225, 4294901760
    %v227 = vsub.f32 %v225, %v226
    %v228 = vand.u32 %v227, 4294901760
    %229 = vmatpush1.msra.mxu0 %v228
    %230 = vmatprep.subr.mxu0 0.0
    %v231 = vand.u32 %v51, 4294901760
    %v232 = vsub.f32 %v51, %v231
    %v233 = vand.u32 %v232, 4294901760
    %v234 = vsub.f32 %v232, %v233
    %v235 = vand.u32 %v234, 4294901760
    %236 = vmatpush1.msra.mxu0 %v235
    %237 = vmatprep.subr.mxu0 0.0
    %v238 = vand.u32 %v52, 4294901760
    %v239 = vsub.f32 %v52, %v238
    %v240 = vand.u32 %v239, 4294901760
    %v241 = vsub.f32 %v239, %v240
    %v242 = vand.u32 %v241, 4294901760
    %243 = vmatpush1.msra.mxu0 %v242
    %244 = vmatprep.subr.mxu0 0.0
    %v245 = vand.u32 %v53, 4294901760
    %v246 = vsub.f32 %v53, %v245
    %v247 = vand.u32 %v246, 4294901760
    %v248 = vsub.f32 %v246, %v247
    %v249 = vand.u32 %v248, 4294901760
    %250 = vmatpush1.msra.mxu0 %v249
    %251 = vmatprep.subr.mxu0 0.0
    %v252 = vand.u32 %v54, 4294901760
    %v253 = vsub.f32 %v54, %v252
    %v254 = vand.u32 %v253, 4294901760
    %v255 = vsub.f32 %v253, %v254
    %v256 = vand.u32 %v255, 4294901760
    %257 = vmatpush1.msra.mxu0 %v256
    %258 = vmatprep.subr.mxu0 0.0
    %259 = vmatpush1.msra.mxu0 0.0
    %260 = vmatprep.subr.mxu0 0.0
    %261 = vmatpush1.msra.mxu0 0.0
    %262 = vmatprep.subr.mxu0 0.0
    %263 = vmatpush1.msra.mxu0 0.0
    %264 = vmatprep.subr.mxu0 0.0
    %265 = vmatpush1.msra.mxu0 0.0
    %266 = vmatprep.subr.mxu0 0.0
    %267 = vmatpush1.msra.mxu0 0.0
    %268 = vmatprep.subr.mxu0 0.0
    %269 = vmatpush1.msra.mxu0 0.0
    %270 = vmatprep.subr.mxu0 0.0
    %271 = vmatpush1.msra.mxu0 0.0
    %272 = vmatprep.subr.mxu0 0.0
    %273 = vmatpush1.msra.mxu0 0.0
    %274 = vmatprep.subr.mxu0 0.0
    %275 = vmatpush1.msra.mxu0 0.0
    %276 = vmatprep.subr.mxu0 0.0
    %277 = vmatpush1.msra.mxu0 0.0
    %278 = vmatprep.subr.mxu0 0.0
    %279 = vmatpush1.msra.mxu0 0.0
    %280 = vmatprep.subr.mxu0 0.0
    %281 = vmatpush1.msra.mxu0 0.0
    %282 = vmatprep.subr.mxu0 0.0
    %283 = vmatpush1.msra.mxu0 0.0
    %284 = vmatprep.subr.mxu0 0.0
    %285 = vmatpush1.msra.mxu0 0.0
    %286 = vmatprep.subr.mxu0 0.0
    %287 = vmatpush1.msra.mxu0 0.0
    %288 = vmatprep.subr.mxu0 0.0
    %289 = vmatpush1.msra.mxu0 0.0
    %290 = vmatprep.mubr.f32.mxu0 0.0
    %v291 = vand.u32 %v38, 4294901760
    %292 = vmatmul.mubr.f32.gmra.mrb[0].mxu0 %v291
    %v293 = vpop.f32.mrb[0].mxu0
    %v294 = vadd.f32 %v143, %v293
    %v295 = vpop.f32.mrb[0].mxu0
    %296 = vdwg.mxu0
    %297 = vmatprep.subr.mxu0 0.0
    %v298 = vand.u32 %v39, 4294901760
    %v299 = vsub.f32 %v39, %v298
    %300 = vmatpush1.msra.mxu0 %v299
    %301 = vmatprep.subr.mxu0 0.0
    %v302 = vand.u32 %v40, 4294901760
    %v303 = vsub.f32 %v40, %v302
    %304 = vmatpush1.msra.mxu0 %v303
    %305 = vmatprep.subr.mxu0 0.0
    %v306 = vand.u32 %v41, 4294901760
    %v307 = vsub.f32 %v41, %v306
    %308 = vmatpush1.msra.mxu0 %v307
    %309 = vmatprep.subr.mxu0 0.0
    %v310 = vand.u32 %v42, 4294901760
    %v311 = vsub.f32 %v42, %v310
    %312 = vmatpush1.msra.mxu0 %v311
    %313 = vmatprep.subr.mxu0 0.0
    %v314 = vand.u32 %v43, 4294901760
    %v315 = vsub.f32 %v43, %v314
    %316 = vmatpush1.msra.mxu0 %v315
    %317 = vmatprep.subr.mxu0 0.0
    %v318 = vand.u32 %v44, 4294901760
    %v319 = vsub.f32 %v44, %v318
    %320 = vmatpush1.msra.mxu0 %v319
    %321 = vmatprep.subr.mxu0 0.0
    %v322 = vand.u32 %v45, 4294901760
    %v323 = vsub.f32 %v45, %v322
    %324 = vmatpush1.msra.mxu0 %v323
    %325 = vmatprep.subr.mxu0 0.0
    %v326 = vand.u32 %v46, 4294901760
    %v327 = vsub.f32 %v46, %v326
    %328 = vmatpush1.msra.mxu0 %v327
    %329 = vmatprep.subr.mxu0 0.0
    %v330 = vand.u32 %v47, 4294901760
    %v331 = vsub.f32 %v47, %v330
    %332 = vmatpush1.msra.mxu0 %v331
    %333 = vmatprep.subr.mxu0 0.0
    %v334 = vand.u32 %v48, 4294901760
    %v335 = vsub.f32 %v48, %v334
    %336 = vmatpush1.msra.mxu0 %v335
    %337 = vmatprep.subr.mxu0 0.0
    %v338 = vand.u32 %v49, 4294901760
    %v339 = vsub.f32 %v49, %v338
    %340 = vmatpush1.msra.mxu0 %v339
    %341 = vmatprep.subr.mxu0 0.0
    %v342 = vand.u32 %v50, 4294901760
    %v343 = vsub.f32 %v50, %v342
    %344 = vmatpush1.msra.mxu0 %v343
    %345 = vmatprep.subr.mxu0 0.0
    %v346 = vand.u32 %v51, 4294901760
    %v347 = vsub.f32 %v51, %v346
    %348 = vmatpush1.msra.mxu0 %v347
    %349 = vmatprep.subr.mxu0 0.0
    %v350 = vand.u32 %v52, 4294901760
    %v351 = vsub.f32 %v52, %v350
    %352 = vmatpush1.msra.mxu0 %v351
    %353 = vmatprep.subr.mxu0 0.0
    %v354 = vand.u32 %v53, 4294901760
    %v355 = vsub.f32 %v53, %v354
    %356 = vmatpush1.msra.mxu0 %v355
    %357 = vmatprep.subr.mxu0 0.0
    %v358 = vand.u32 %v54, 4294901760
    %v359 = vsub.f32 %v54, %v358
    %360 = vmatpush1.msra.mxu0 %v359
    %361 = vmatprep.subr.mxu0 0.0
    %362 = vmatpush1.msra.mxu0 0.0
    %363 = vmatprep.subr.mxu0 0.0
    %364 = vmatpush1.msra.mxu0 0.0
    %365 = vmatprep.subr.mxu0 0.0
    %366 = vmatpush1.msra.mxu0 0.0
    %367 = vmatprep.subr.mxu0 0.0
    %368 = vmatpush1.msra.mxu0 0.0
    %369 = vmatprep.subr.mxu0 0.0
    %370 = vmatpush1.msra.mxu0 0.0
    %371 = vmatprep.subr.mxu0 0.0
    %372 = vmatpush1.msra.mxu0 0.0
    %373 = vmatprep.subr.mxu0 0.0
    %374 = vmatpush1.msra.mxu0 0.0
    %375 = vmatprep.subr.mxu0 0.0
    %376 = vmatpush1.msra.mxu0 0.0
    %377 = vmatprep.subr.mxu0 0.0
    %378 = vmatpush1.msra.mxu0 0.0
    %379 = vmatprep.subr.mxu0 0.0
    %380 = vmatpush1.msra.mxu0 0.0
    %381 = vmatprep.subr.mxu0 0.0
    %382 = vmatpush1.msra.mxu0 0.0
    %383 = vmatprep.subr.mxu0 0.0
    %384 = vmatpush1.msra.mxu0 0.0
    %385 = vmatprep.subr.mxu0 0.0
    %386 = vmatpush1.msra.mxu0 0.0
    %387 = vmatprep.subr.mxu0 0.0
    %388 = vmatpush1.msra.mxu0 0.0
    %389 = vmatprep.subr.mxu0 0.0
    %390 = vmatpush1.msra.mxu0 0.0
    %391 = vmatprep.subr.mxu0 0.0
    %392 = vmatpush1.msra.mxu0 0.0
    %393 = vmatprep.mubr.f32.mxu0 0.0
    %v394 = vand.u32 %v38, 4294901760
    %v395 = vsub.f32 %v38, %v394
    %396 = vmatmul.mubr.f32.gmra.mrb[0].mxu0 %v395
    %v397 = vpop.f32.mrb[0].mxu0
    %v398 = vadd.f32 %v294, %v397
    %v399 = vpop.f32.mrb[0].mxu0
    %400 = vdwg.mxu0
    %401 = vmatprep.subr.mxu0 0.0
    %v402 = vand.u32 %v39, 4294901760
    %403 = vmatpush1.msra.mxu0 %v402
    %404 = vmatprep.subr.mxu0 0.0
    %v405 = vand.u32 %v40, 4294901760
    %406 = vmatpush1.msra.mxu0 %v405
    %407 = vmatprep.subr.mxu0 0.0
    %v408 = vand.u32 %v41, 4294901760
    %409 = vmatpush1.msra.mxu0 %v408
    %410 = vmatprep.subr.mxu0 0.0
    %v411 = vand.u32 %v42, 4294901760
    %412 = vmatpush1.msra.mxu0 %v411
    %413 = vmatprep.subr.mxu0 0.0
    %v414 = vand.u32 %v43, 4294901760
    %415 = vmatpush1.msra.mxu0 %v414
    %416 = vmatprep.subr.mxu0 0.0
    %v417 = vand.u32 %v44, 4294901760
    %418 = vmatpush1.msra.mxu0 %v417
    %419 = vmatprep.subr.mxu0 0.0
    %v420 = vand.u32 %v45, 4294901760
    %421 = vmatpush1.msra.mxu0 %v420
    %422 = vmatprep.subr.mxu0 0.0
    %v423 = vand.u32 %v46, 4294901760
    %424 = vmatpush1.msra.mxu0 %v423
    %425 = vmatprep.subr.mxu0 0.0
    %v426 = vand.u32 %v47, 4294901760
    %427 = vmatpush1.msra.mxu0 %v426
    %428 = vmatprep.subr.mxu0 0.0
    %v429 = vand.u32 %v48, 4294901760
    %430 = vmatpush1.msra.mxu0 %v429
    %431 = vmatprep.subr.mxu0 0.0
    %v432 = vand.u32 %v49, 4294901760
    %433 = vmatpush1.msra.mxu0 %v432
    %434 = vmatprep.subr.mxu0 0.0
    %v435 = vand.u32 %v50, 4294901760
    %436 = vmatpush1.msra.mxu0 %v435
    %437 = vmatprep.subr.mxu0 0.0
    %v438 = vand.u32 %v51, 4294901760
    %439 = vmatpush1.msra.mxu0 %v438
    %440 = vmatprep.subr.mxu0 0.0
    %v441 = vand.u32 %v52, 4294901760
    %442 = vmatpush1.msra.mxu0 %v441
    %443 = vmatprep.subr.mxu0 0.0
    %v444 = vand.u32 %v53, 4294901760
    %445 = vmatpush1.msra.mxu0 %v444
    %446 = vmatprep.subr.mxu0 0.0
    %v447 = vand.u32 %v54, 4294901760
    %448 = vmatpush1.msra.mxu0 %v447
    %449 = vmatprep.subr.mxu0 0.0
    %450 = vmatpush1.msra.mxu0 0.0
    %451 = vmatprep.subr.mxu0 0.0
    %452 = vmatpush1.msra.mxu0 0.0
    %453 = vmatprep.subr.mxu0 0.0
    %454 = vmatpush1.msra.mxu0 0.0
    %455 = vmatprep.subr.mxu0 0.0
    %456 = vmatpush1.msra.mxu0 0.0
    %457 = vmatprep.subr.mxu0 0.0
    %458 = vmatpush1.msra.mxu0 0.0
    %459 = vmatprep.subr.mxu0 0.0
    %460 = vmatpush1.msra.mxu0 0.0
    %461 = vmatprep.subr.mxu0 0.0
    %462 = vmatpush1.msra.mxu0 0.0
    %463 = vmatprep.subr.mxu0 0.0
    %464 = vmatpush1.msra.mxu0 0.0
    %465 = vmatprep.subr.mxu0 0.0
    %466 = vmatpush1.msra.mxu0 0.0
    %467 = vmatprep.subr.mxu0 0.0
    %468 = vmatpush1.msra.mxu0 0.0
    %469 = vmatprep.subr.mxu0 0.0
    %470 = vmatpush1.msra.mxu0 0.0
    %471 = vmatprep.subr.mxu0 0.0
    %472 = vmatpush1.msra.mxu0 0.0
    %473 = vmatprep.subr.mxu0 0.0
    %474 = vmatpush1.msra.mxu0 0.0
    %475 = vmatprep.subr.mxu0 0.0
    %476 = vmatpush1.msra.mxu0 0.0
    %477 = vmatprep.subr.mxu0 0.0
    %478 = vmatpush1.msra.mxu0 0.0
    %479 = vmatprep.subr.mxu0 0.0
    %480 = vmatpush1.msra.mxu0 0.0
    %481 = vmatprep.mubr.f32.mxu0 0.0
    %v482 = vand.u32 %v38, 4294901760
    %v483 = vsub.f32 %v38, %v482
    %v484 = vand.u32 %v483, 4294901760
    %485 = vmatmul.mubr.f32.gmra.mrb[0].mxu0 %v484
    %v486 = vpop.f32.mrb[0].mxu0
    %v487 = vadd.f32 %v398, %v486
    %v488 = vpop.f32.mrb[0].mxu0
    %489 = vdwg.mxu0
    %490 = vmatprep.subr.mxu0 0.0
    %v491 = vand.u32 %v39, 4294901760
    %v492 = vsub.f32 %v39, %v491
    %v493 = vand.u32 %v492, 4294901760
    %494 = vmatpush1.msra.mxu0 %v493
    %495 = vmatprep.subr.mxu0 0.0
    %v496 = vand.u32 %v40, 4294901760
    %v497 = vsub.f32 %v40, %v496
    %v498 = vand.u32 %v497, 4294901760
    %499 = vmatpush1.msra.mxu0 %v498
    %500 = vmatprep.subr.mxu0 0.0
    %v501 = vand.u32 %v41, 4294901760
    %v502 = vsub.f32 %v41, %v501
    %v503 = vand.u32 %v502, 4294901760
    %504 = vmatpush1.msra.mxu0 %v503
    %505 = vmatprep.subr.mxu0 0.0
    %v506 = vand.u32 %v42, 4294901760
    %v507 = vsub.f32 %v42, %v506
    %v508 = vand.u32 %v507, 4294901760
    %509 = vmatpush1.msra.mxu0 %v508
    %510 = vmatprep.subr.mxu0 0.0
    %v511 = vand.u32 %v43, 4294901760
    %v512 = vsub.f32 %v43, %v511
    %v513 = vand.u32 %v512, 4294901760
    %514 = vmatpush1.msra.mxu0 %v513
    %515 = vmatprep.subr.mxu0 0.0
    %v516 = vand.u32 %v44, 4294901760
    %v517 = vsub.f32 %v44, %v516
    %v518 = vand.u32 %v517, 4294901760
    %519 = vmatpush1.msra.mxu0 %v518
    %520 = vmatprep.subr.mxu0 0.0
    %v521 = vand.u32 %v45, 4294901760
    %v522 = vsub.f32 %v45, %v521
    %v523 = vand.u32 %v522, 4294901760
    %524 = vmatpush1.msra.mxu0 %v523
    %525 = vmatprep.subr.mxu0 0.0
    %v526 = vand.u32 %v46, 4294901760
    %v527 = vsub.f32 %v46, %v526
    %v528 = vand.u32 %v527, 4294901760
    %529 = vmatpush1.msra.mxu0 %v528
    %530 = vmatprep.subr.mxu0 0.0
    %v531 = vand.u32 %v47, 4294901760
    %v532 = vsub.f32 %v47, %v531
    %v533 = vand.u32 %v532, 4294901760
    %534 = vmatpush1.msra.mxu0 %v533
    %535 = vmatprep.subr.mxu0 0.0
    %v536 = vand.u32 %v48, 4294901760
    %v537 = vsub.f32 %v48, %v536
    %v538 = vand.u32 %v537, 4294901760
    %539 = vmatpush1.msra.mxu0 %v538
    %540 = vmatprep.subr.mxu0 0.0
    %v541 = vand.u32 %v49, 4294901760
    %v542 = vsub.f32 %v49, %v541
    %v543 = vand.u32 %v542, 4294901760
    %544 = vmatpush1.msra.mxu0 %v543
    %545 = vmatprep.subr.mxu0 0.0
    %v546 = vand.u32 %v50, 4294901760
    %v547 = vsub.f32 %v50, %v546
    %v548 = vand.u32 %v547, 4294901760
    %549 = vmatpush1.msra.mxu0 %v548
    %550 = vmatprep.subr.mxu0 0.0
    %v551 = vand.u32 %v51, 4294901760
    %v552 = vsub.f32 %v51, %v551
    %v553 = vand.u32 %v552, 4294901760
    %554 = vmatpush1.msra.mxu0 %v553
    %555 = vmatprep.subr.mxu0 0.0
    %v556 = vand.u32 %v52, 4294901760
    %v557 = vsub.f32 %v52, %v556
    %v558 = vand.u32 %v557, 4294901760
    %559 = vmatpush1.msra.mxu0 %v558
    %560 = vmatprep.subr.mxu0 0.0
    %v561 = vand.u32 %v53, 4294901760
    %v562 = vsub.f32 %v53, %v561
    %v563 = vand.u32 %v562, 4294901760
    %564 = vmatpush1.msra.mxu0 %v563
    %565 = vmatprep.subr.mxu0 0.0
    %v566 = vand.u32 %v54, 4294901760
    %v567 = vsub.f32 %v54, %v566
    %v568 = vand.u32 %v567, 4294901760
    %569 = vmatpush1.msra.mxu0 %v568
    %570 = vmatprep.subr.mxu0 0.0
    %571 = vmatpush1.msra.mxu0 0.0
    %572 = vmatprep.subr.mxu0 0.0
    %573 = vmatpush1.msra.mxu0 0.0
    %574 = vmatprep.subr.mxu0 0.0
    %575 = vmatpush1.msra.mxu0 0.0
    %576 = vmatprep.subr.mxu0 0.0
    %577 = vmatpush1.msra.mxu0 0.0
    %578 = vmatprep.subr.mxu0 0.0
    %579 = vmatpush1.msra.mxu0 0.0
    %580 = vmatprep.subr.mxu0 0.0
    %581 = vmatpush1.msra.mxu0 0.0
    %582 = vmatprep.subr.mxu0 0.0
    %583 = vmatpush1.msra.mxu0 0.0
    %584 = vmatprep.subr.mxu0 0.0
    %585 = vmatpush1.msra.mxu0 0.0
    %586 = vmatprep.subr.mxu0 0.0
    %587 = vmatpush1.msra.mxu0 0.0
    %588 = vmatprep.subr.mxu0 0.0
    %589 = vmatpush1.msra.mxu0 0.0
    %590 = vmatprep.subr.mxu0 0.0
    %591 = vmatpush1.msra.mxu0 0.0
    %592 = vmatprep.subr.mxu0 0.0
    %593 = vmatpush1.msra.mxu0 0.0
    %594 = vmatprep.subr.mxu0 0.0
    %595 = vmatpush1.msra.mxu0 0.0
    %596 = vmatprep.subr.mxu0 0.0
    %597 = vmatpush1.msra.mxu0 0.0
    %598 = vmatprep.subr.mxu0 0.0
    %599 = vmatpush1.msra.mxu0 0.0
    %600 = vmatprep.subr.mxu0 0.0
    %601 = vmatpush1.msra.mxu0 0.0
    %602 = vmatprep.mubr.f32.mxu0 0.0
    %v603 = vand.u32 %v38, 4294901760
    %604 = vmatmul.mubr.f32.gmra.mrb[0].mxu0 %v603
    %v605 = vpop.f32.mrb[0].mxu0
    %v606 = vadd.f32 %v487, %v605
    %v607 = vpop.f32.mrb[0].mxu0
    %608 = vdwg.mxu0
    %609 = vmatprep.subr.mxu0 0.0
    %v610 = vand.u32 %v39, 4294901760
    %611 = vmatpush1.msra.mxu0 %v610
    %612 = vmatprep.subr.mxu0 0.0
    %v613 = vand.u32 %v40, 4294901760
    %614 = vmatpush1.msra.mxu0 %v613
    %615 = vmatprep.subr.mxu0 0.0
    %v616 = vand.u32 %v41, 4294901760
    %617 = vmatpush1.msra.mxu0 %v616
    %618 = vmatprep.subr.mxu0 0.0
    %v619 = vand.u32 %v42, 4294901760
    %620 = vmatpush1.msra.mxu0 %v619
    %621 = vmatprep.subr.mxu0 0.0
    %v622 = vand.u32 %v43, 4294901760
    %623 = vmatpush1.msra.mxu0 %v622
    %624 = vmatprep.subr.mxu0 0.0
    %v625 = vand.u32 %v44, 4294901760
    %626 = vmatpush1.msra.mxu0 %v625
    %627 = vmatprep.subr.mxu0 0.0
    %v628 = vand.u32 %v45, 4294901760
    %629 = vmatpush1.msra.mxu0 %v628
    %630 = vmatprep.subr.mxu0 0.0
    %v631 = vand.u32 %v46, 4294901760
    %632 = vmatpush1.msra.mxu0 %v631
    %633 = vmatprep.subr.mxu0 0.0
    %v634 = vand.u32 %v47, 4294901760
    %635 = vmatpush1.msra.mxu0 %v634
    %636 = vmatprep.subr.mxu0 0.0
    %v637 = vand.u32 %v48, 4294901760
    %638 = vmatpush1.msra.mxu0 %v637
    %639 = vmatprep.subr.mxu0 0.0
    %v640 = vand.u32 %v49, 4294901760
    %641 = vmatpush1.msra.mxu0 %v640
    %642 = vmatprep.subr.mxu0 0.0
    %v643 = vand.u32 %v50, 4294901760
    %644 = vmatpush1.msra.mxu0 %v643
    %645 = vmatprep.subr.mxu0 0.0
    %v646 = vand.u32 %v51, 4294901760
    %647 = vmatpush1.msra.mxu0 %v646
    %648 = vmatprep.subr.mxu0 0.0
    %v649 = vand.u32 %v52, 4294901760
    %650 = vmatpush1.msra.mxu0 %v649
    %651 = vmatprep.subr.mxu0 0.0
    %v652 = vand.u32 %v53, 4294901760
    %653 = vmatpush1.msra.mxu0 %v652
    %654 = vmatprep.subr.mxu0 0.0
    %v655 = vand.u32 %v54, 4294901760
    %656 = vmatpush1.msra.mxu0 %v655
    %657 = vmatprep.subr.mxu0 0.0
    %658 = vmatpush1.msra.mxu0 0.0
    %659 = vmatprep.subr.mxu0 0.0
    %660 = vmatpush1.msra.mxu0 0.0
    %661 = vmatprep.subr.mxu0 0.0
    %662 = vmatpush1.msra.mxu0 0.0
    %663 = vmatprep.subr.mxu0 0.0
    %664 = vmatpush1.msra.mxu0 0.0
    %665 = vmatprep.subr.mxu0 0.0
    %666 = vmatpush1.msra.mxu0 0.0
    %667 = vmatprep.subr.mxu0 0.0
    %668 = vmatpush1.msra.mxu0 0.0
    %669 = vmatprep.subr.mxu0 0.0
    %670 = vmatpush1.msra.mxu0 0.0
    %671 = vmatprep.subr.mxu0 0.0
    %672 = vmatpush1.msra.mxu0 0.0
    %673 = vmatprep.subr.mxu0 0.0
    %674 = vmatpush1.msra.mxu0 0.0
    %675 = vmatprep.subr.mxu0 0.0
    %676 = vmatpush1.msra.mxu0 0.0
    %677 = vmatprep.subr.mxu0 0.0
    %678 = vmatpush1.msra.mxu0 0.0
    %679 = vmatprep.subr.mxu0 0.0
    %680 = vmatpush1.msra.mxu0 0.0
    %681 = vmatprep.subr.mxu0 0.0
    %682 = vmatpush1.msra.mxu0 0.0
    %683 = vmatprep.subr.mxu0 0.0
    %684 = vmatpush1.msra.mxu0 0.0
    %685 = vmatprep.subr.mxu0 0.0
    %686 = vmatpush1.msra.mxu0 0.0
    %687 = vmatprep.subr.mxu0 0.0
    %688 = vmatpush1.msra.mxu0 0.0
    %689 = vmatprep.mubr.f32.mxu0 0.0
    %v690 = vand.u32 %v38, 4294901760
    %691 = vmatmul.mubr.f32.gmra.mrb[0].mxu0 %v690
    %v692 = vpop.f32.mrb[0].mxu0
    %v693 = vadd.f32 %v606, %v692
    %v694 = vpop.f32.mrb[0].mxu0
    %695 = vdwg.mxu0
    %696 = vst [vmem:[#allocation7] sm:$0xff] %v693
    // Predicated region
    $region18: #{tpu_custom_call.1} parent=1 // pred_check
      _
    $region19: #{tpu_custom_call.1} parent=1 // pred_check_branch
      %698 = sbr.rel (0) target = $region21
    $region20: #{tpu_custom_call.1} parent=1 // pred_region
      %s700 = ssub.s32 128, 128
      %701 = vsyncadd [#allocation4], %s700
      %s703 = sshll.u32 [#allocation7], 4
      %s704 = int_to_ptr.vmem [resolvable:$true] %s703
      %706 = dma.vmem_to_hbm [thread:$0]  %s704, 128, %s2, [#allocation4]
    $region21: #{tpu_custom_call.1} parent=1 // pred_fallthru
      _
    // Predicated region
    $region22: #{tpu_custom_call.1} parent=1 // pred_check
      _
    $region23: #{tpu_custom_call.1} parent=1 // pred_check_branch
      %708 = sbr.rel (0) target = $region25
    $region24: #{tpu_custom_call.1} parent=1 // pred_region
      %709 = dma.done [#allocation4], 128
    $region25: #{tpu_custom_call.1} parent=1 // pred_fallthru
      _
    %710 = vsyncpa [#allocation3], 1
    %711 = vsyncpa [#allocation6], 1
    %712 = vsyncpa [#allocation4], 1

// kernel: tpu_custom_call.1
$region0: #{tpu_custom_call.1}
  #allocation0 [shape = 'u32[]', space=smem, size = 0x4, offset = 0x4, fixed_abs, tag = 'smem constant byte address 0x4 - core index']
  #allocation1 [shape = 'u32[144,128]{1,0:T(1,128)}', space=vmem, size = 0x12000, scoped, tag = 'internal scratch']
  %s0 = inlined_call_operand.hbm [shape: f32[8,128], index: 0, kind: input, shape index: {}]
  %s1 = inlined_call_operand.hbm [shape: f32[128,128], index: 1, kind: input, shape index: {}]
  %s2 = inlined_call_operand.hbm [shape: f32[8,128], index: 2, kind: output, shape index: {}]
  %s3 = sld [smem:[#allocation0]]
  $region26: #{tpu_custom_call.1} parent=0
    _
  %s5 = ssub.s32 1, %s3
  %s6 = scalar_select 0, %s5, %s3
  $region1: #{tpu_custom_call.1} parent=0
    #allocation2 [shape = 'u8[4096]{0}', space=vmem, size = 0x1000, scoped, tag = 'input window, operand 0, single buffered']
    #allocation3 [shape = 's32[1]{0}', space=sflag, size = 0x4, scoped, tag = 'scoped memory for tpu_custom_call.1']
    #allocation4 [shape = 's32[1]{0}', space=sflag, size = 0x4, scoped, tag = 'scoped memory for tpu_custom_call.1']
    #allocation5 [shape = 'u8[65536]{0}', space=vmem, size = 0x10000, scoped, tag = 'input window, operand 1, single buffered']
    #allocation6 [shape = 's32[1]{0}', space=sflag, size = 0x4, scoped, tag = 'scoped memory for tpu_custom_call.1']
    #allocation7 [shape = 'u8[4096]{0}', space=vmem, size = 0x1000, scoped, tag = 'output window, operand 0, single buffered']
    %7 = vsyncpa [#allocation3], 0
    %8 = vsyncpa [#allocation6], 0
    %9 = vsyncpa [#allocation4], 0
    // Predicated region
    $region2: #{tpu_custom_call.1} parent=1 // pred_check
      _
    $region3: #{tpu_custom_call.1} parent=1 // pred_check_branch
      %11 = sbr.rel (0) target = $region5
    $region4: #{tpu_custom_call.1} parent=1 // pred_region
      %s13 = ssub.s32 128, 128
      %14 = vsyncadd [#allocation3], %s13
      %s16 = sshll.u32 [#allocation2], 4
      %s17 = int_to_ptr.vmem [resolvable:$true] %s16
      %19 = dma.hbm_to_vmem [thread:$0]  %s0, 128, %s17, [#allocation3]
    $region5: #{tpu_custom_call.1} parent=1 // pred_fallthru
      _
    // Predicated region
    $region6: #{tpu_custom_call.1} parent=1 // pred_check
      _
    $region7: #{tpu_custom_call.1} parent=1 // pred_check_branch
      %21 = sbr.rel (0) target = $region9
    $region8: #{tpu_custom_call.1} parent=1 // pred_region
      %s23 = ssub.s32 2048, 2048
      %24 = vsyncadd [#allocation6], %s23
      %s25 = sshll.u32 [#allocation5], 4
      %s26 = int_to_ptr.vmem [resolvable:$true] %s25
      %31 = dma.hbm_to_vmem [thread:$0]  %s1, 2048, %s26, [#allocation6], 128, 128, 8
    $region9: #{tpu_custom_call.1} parent=1 // pred_fallthru
      _
    // Predicated region
    $region10: #{tpu_custom_call.1} parent=1 // pred_check
      _
    $region11: #{tpu_custom_call.1} parent=1 // pred_check_branch
      %33 = sbr.rel (0) target = $region13
    $region12: #{tpu_custom_call.1} parent=1 // pred_region
      %34 = dma.done [#allocation3], 128
    $region13: #{tpu_custom_call.1} parent=1 // pred_fallthru
      _
    // Predicated region
    $region14: #{tpu_custom_call.1} parent=1 // pred_check
      _
    $region15: #{tpu_custom_call.1} parent=1 // pred_check_branch
      %36 = sbr.rel (0) target = $region17
    $region16: #{tpu_custom_call.1} parent=1 // pred_region
      %37 = dma.done [#allocation6], 2048
    $region17: #{tpu_custom_call.1} parent=1 // pred_fallthru
      _
    %v38 = vld [vmem:[#allocation2] sm:$0xff]
    %v39 = vld [vmem:[#allocation5] sm:$0xff]
    %v40 = vld [vmem:[#allocation5 + $0x8] sm:$0xff]
    %v41 = vld [vmem:[#allocation5 + $0x10] sm:$0xff]
    %v42 = vld [vmem:[#allocation5 + $0x18] sm:$0xff]
    %v43 = vld [vmem:[#allocation5 + $0x20] sm:$0xff]
    %v44 = vld [vmem:[#allocation5 + $0x28] sm:$0xff]
    %v45 = vld [vmem:[#allocation5 + $0x30] sm:$0xff]
    %v46 = vld [vmem:[#allocation5 + $0x38] sm:$0xff]
    %v47 = vld [vmem:[#allocation5 + $0x40] sm:$0xff]
    %v48 = vld [vmem:[#allocation5 + $0x48] sm:$0xff]
    %v49 = vld [vmem:[#allocation5 + $0x50] sm:$0xff]
    %v50 = vld [vmem:[#allocation5 + $0x58] sm:$0xff]
    %v51 = vld [vmem:[#allocation5 + $0x60] sm:$0xff]
    %v52 = vld [vmem:[#allocation5 + $0x68] sm:$0xff]
    %v53 = vld [vmem:[#allocation5 + $0x70] sm:$0xff]
    %v54 = vld [vmem:[#allocation5 + $0x78] sm:$0xff]
    %55 = vmatprep.subr.mxu0 0.0
    %56 = vmatpush1.msra.mxu0 %v39
    %57 = vmatprep.subr.mxu0 0.0
    %58 = vmatpush1.msra.mxu0 %v40
    %59 = vmatprep.subr.mxu0 0.0
    %60 = vmatpush1.msra.mxu0 %v41
    %61 = vmatprep.subr.mxu0 0.0
    %62 = vmatpush1.msra.mxu0 %v42
    %63 = vmatprep.subr.mxu0 0.0
    %64 = vmatpush1.msra.mxu0 %v43
    %65 = vmatprep.subr.mxu0 0.0
    %66 = vmatpush1.msra.mxu0 %v44
    %67 = vmatprep.subr.mxu0 0.0
    %68 = vmatpush1.msra.mxu0 %v45
    %69 = vmatprep.subr.mxu0 0.0
    %70 = vmatpush1.msra.mxu0 %v46
    %71 = vmatprep.subr.mxu0 0.0
    %72 = vmatpush1.msra.mxu0 %v47
    %73 = vmatprep.subr.mxu0 0.0
    %74 = vmatpush1.msra.mxu0 %v48
    %75 = vmatprep.subr.mxu0 0.0
    %76 = vmatpush1.msra.mxu0 %v49
    %77 = vmatprep.subr.mxu0 0.0
    %78 = vmatpush1.msra.mxu0 %v50
    %79 = vmatprep.subr.mxu0 0.0
    %80 = vmatpush1.msra.mxu0 %v51
    %81 = vmatprep.subr.mxu0 0.0
    %82 = vmatpush1.msra.mxu0 %v52
    %83 = vmatprep.subr.mxu0 0.0
    %84 = vmatpush1.msra.mxu0 %v53
    %85 = vmatprep.subr.mxu0 0.0
    %86 = vmatpush1.msra.mxu0 %v54
    %87 = vmatprep.subr.mxu0 0.0
    %88 = vmatpush1.msra.mxu0 0.0
    %89 = vmatprep.subr.mxu0 0.0
    %90 = vmatpush1.msra.mxu0 0.0
    %91 = vmatprep.subr.mxu0 0.0
    %92 = vmatpush1.msra.mxu0 0.0
    %93 = vmatprep.subr.mxu0 0.0
    %94 = vmatpush1.msra.mxu0 0.0
    %95 = vmatprep.subr.mxu0 0.0
    %96 = vmatpush1.msra.mxu0 0.0
    %97 = vmatprep.subr.mxu0 0.0
    %98 = vmatpush1.msra.mxu0 0.0
    %99 = vmatprep.subr.mxu0 0.0
    %100 = vmatpush1.msra.mxu0 0.0
    %101 = vmatprep.subr.mxu0 0.0
    %102 = vmatpush1.msra.mxu0 0.0
    %103 = vmatprep.subr.mxu0 0.0
    %104 = vmatpush1.msra.mxu0 0.0
    %105 = vmatprep.subr.mxu0 0.0
    %106 = vmatpush1.msra.mxu0 0.0
    %107 = vmatprep.subr.mxu0 0.0
    %108 = vmatpush1.msra.mxu0 0.0
    %109 = vmatprep.subr.mxu0 0.0
    %110 = vmatpush1.msra.mxu0 0.0
    %111 = vmatprep.subr.mxu0 0.0
    %112 = vmatpush1.msra.mxu0 0.0
    %113 = vmatprep.subr.mxu0 0.0
    %114 = vmatpush1.msra.mxu0 0.0
    %115 = vmatprep.subr.mxu0 0.0
    %116 = vmatpush1.msra.mxu0 0.0
    %117 = vmatprep.subr.mxu0 0.0
    %118 = vmatpush1.msra.mxu0 0.0
    %119 = vmatprep.mubr.f32.mxu0 0.0
    %120 = vmatmul.mubr.f32.gmra.mrb[0].mxu0 %v38
    %v121 = vpop.f32.mrb[0].mxu0
    %v122 = vadd.f32 0.0, %v121
    %v123 = vpop.f32.mrb[0].mxu0
    %124 = vdwg.mxu0
    %125 = vst [vmem:[#allocation7] sm:$0xff] %v122
    // Predicated region
    $region18: #{tpu_custom_call.1} parent=1 // pred_check
      _
    $region19: #{tpu_custom_call.1} parent=1 // pred_check_branch
      %127 = sbr.rel (0) target = $region21
    $region20: #{tpu_custom_call.1} parent=1 // pred_region
      %s129 = ssub.s32 128, 128
      %130 = vsyncadd [#allocation4], %s129
      %s132 = sshll.u32 [#allocation7], 4
      %s133 = int_to_ptr.vmem [resolvable:$true] %s132
      %135 = dma.vmem_to_hbm [thread:$0]  %s133, 128, %s2, [#allocation4]
    $region21: #{tpu_custom_call.1} parent=1 // pred_fallthru
      _
    // Predicated region
    $region22: #{tpu_custom_call.1} parent=1 // pred_check
      _
    $region23: #{tpu_custom_call.1} parent=1 // pred_check_branch
      %137 = sbr.rel (0) target = $region25
    $region24: #{tpu_custom_call.1} parent=1 // pred_region
      %138 = dma.done [#allocation4], 128
    $region25: #{tpu_custom_call.1} parent=1 // pred_fallthru
      _
    %139 = vsyncpa [#allocation3], 1
    %140 = vsyncpa [#allocation6], 1
    %141 = vsyncpa [#allocation4], 1

// kernel: tpu_custom_call.1
$region0: #{tpu_custom_call.1}
  #allocation0 [shape = 'u32[]', space=smem, size = 0x4, offset = 0x4, fixed_abs, tag = 'smem constant byte address 0x4 - core index']
  #allocation1 [shape = 'u32[144,128]{1,0:T(1,128)}', space=vmem, size = 0x12000, scoped, tag = 'internal scratch']
  %s0 = inlined_call_operand.vmem [shape: f32[3,16,16], index: 0, kind: input, shape index: {}]
  %s1 = inlined_call_operand.vmem [shape: f32[2,16,8], index: 1, kind: input, shape index: {}]
  %s2 = inlined_call_operand.vmem [shape: f32[2,16,8], index: 2, kind: output, shape index: {0}]
  %s3 = inlined_call_operand.vmem [shape: f32[2,16,8], index: 3, kind: output, shape index: {1}]
  %s4 = inlined_call_operand.vmem [shape: f32[2,16,8], index: 4, kind: output, shape index: {2}]
  %s5 = inlined_call_operand.vmem [shape: f32[2,16,8], index: 5, kind: output, shape index: {3}]
  %6 = xla_tuple %s2, %s3, %s4, %s5
  %s7 = sld [smem:[#allocation0]]
  $region65: #{tpu_custom_call.1} parent=0
    _
  %s9 = ssub.s32 1, %s7
  %s10 = scalar_select 0, %s9, %s7
  loop: start=0, step=1, limit=4
  $region2: #{tpu_custom_call.1} parent=0 // loop_pre_header
    _
  $region3: #{tpu_custom_call.1} parent=0 // loop_header
    %s12 = sphi 0, %s16
    %p13 = scmp.ge.s32.totalorder %s12, 4
    %s19 = sphi 0, %s31
    %s20 = sphi 0, %s27
    %s21 = sphi 0, %s19
    %s22 = sphi 0, %s20
    %s23 = sphi 0, %s21
    %s24 = sphi 0, %s22
    %s32 = sphi 0, %s32
    %s34 = sphi 0, %s32
    %s35 = sphi 0, %s34
    %s49 = sphi 0, %s35
    %s57 = sphi 0, %s59
    %s60 = sphi 0, %s57
    %s61 = sphi 0, %s60
    %s77 = sphi 0, %s61
    %s85 = sphi 0, %s87
    %s88 = sphi 0, %s85
    %s89 = sphi 0, %s88
    %s105 = sphi 0, %s89
    %s113 = sphi 0, %s115
    %s116 = sphi 0, %s113
    %s117 = sphi 0, %s116
    %s133 = sphi 0, %s117
    %s141 = sphi 0, %s143
    %s144 = sphi 0, %s141
    %s145 = sphi 0, %s144
    %s161 = sphi 0, %s145
    %s169 = sphi 0, %s171
    %s172 = sphi 0, %s169
    %s173 = sphi 0, %s172
    %s189 = sphi 0, %s173
  $region4: #{tpu_custom_call.1} parent=0 // loop_header_branch
    %15 = sbr.rel (%p13) target = $region8
  $region5: #{tpu_custom_call.1} parent=0 // loop_body
    %s17 = ssub.s32 %s12, 1
    %s18 = ssub.s32 %s12, 2
    %s25 = sadd.s32 1, %s20
    %p26 = scmp.ge.s32.totalorder %s25, 1
    %s27 = scalar_select %p26, 0, %s25
    %s28 = sadd.s32 1, %s19
    %s29 = scalar_select %p26, %s28, %s19
    %p30 = scmp.ge.s32.totalorder %s29, 2
    %s31 = scalar_select %p30, 0, %s29
    %s33 = sadd.s32 %s32, 1
    %p36 = scmp.eq.s32.totalorder %s12, 1
    %p37 = scmp.ne.s32.totalorder %s32, %s34
    %p38 = scmp.eq.s32.totalorder %s12, 0
    %p39 = por %p37, %p38
    %p40 = scmp.ne.s32.totalorder %s32, %s34
    %p41 = scmp.eq.s32.totalorder %s17, 1
    %p42 = por %p40, %p41
    %p43 = scmp.ne.s32.totalorder %s34, %s35
    %p44 = scmp.eq.s32.totalorder %s17, 0
    %p45 = por %p43, %p44
    %p46 = scmp.ne.s32.totalorder %s34, %s35
    %p47 = scmp.eq.s32.totalorder %s18, 1
    %p48 = por %p46, %p47
    %p50 = scmp.ne.s32.totalorder %s35, %s49
    %p51 = scmp.eq.s32.totalorder %s18, 0
    %p52 = por %p50, %p51
    %s53 = ssub.s32 %s19, %s31
    %s54 = ssub.s32 %s20, %s27
    %s55 = sor.u32 %s53, %s54
    %p56 = scmp.eq.s32.totalorder %s55, 0
    %s58 = sadd.s32 %s57, 1
    %s59 = scalar_select %p56, %s57, %s58
    %p62 = pneg %p56
    %p63 = scmp.eq.s32.totalorder %s12, 1
    %p64 = por %p62, %p63
    %p65 = scmp.ne.s32.totalorder %s57, %s60
    %p66 = scmp.eq.s32.totalorder %s12, 0
    %p67 = por %p65, %p66
    %p68 = scmp.ne.s32.totalorder %s57, %s60
    %p69 = scmp.eq.s32.totalorder %s17, 1
    %p70 = por %p68, %p69
    %p71 = scmp.ne.s32.totalorder %s60, %s61
    %p72 = scmp.eq.s32.totalorder %s17, 0
    %p73 = por %p71, %p72
    %p74 = scmp.ne.s32.totalorder %s60, %s61
    %p75 = scmp.eq.s32.totalorder %s18, 1
    %p76 = por %p74, %p75
    %p78 = scmp.ne.s32.totalorder %s61, %s77
    %p79 = scmp.eq.s32.totalorder %s18, 0
    %p80 = por %p78, %p79
    %s81 = ssub.s32 %s19, %s31
    %s82 = ssub.s32 %s20, %s27
    %s83 = sor.u32 %s81, %s82
    %p84 = scmp.eq.s32.totalorder %s83, 0
    %s86 = sadd.s32 %s85, 1
    %s87 = scalar_select %p84, %s85, %s86
    %p90 = pneg %p84
    %p91 = scmp.eq.s32.totalorder %s12, 1
    %p92 = por %p90, %p91
    %p93 = scmp.ne.s32.totalorder %s85, %s88
    %p94 = scmp.eq.s32.totalorder %s12, 0
    %p95 = por %p93, %p94
    %p96 = scmp.ne.s32.totalorder %s85, %s88
    %p97 = scmp.eq.s32.totalorder %s17, 1
    %p98 = por %p96, %p97
    %p99 = scmp.ne.s32.totalorder %s88, %s89
    %p100 = scmp.eq.s32.totalorder %s17, 0
    %p101 = por %p99, %p100
    %p102 = scmp.ne.s32.totalorder %s88, %s89
    %p103 = scmp.eq.s32.totalorder %s18, 1
    %p104 = por %p102, %p103
    %p106 = scmp.ne.s32.totalorder %s89, %s105
    %p107 = scmp.eq.s32.totalorder %s18, 0
    %p108 = por %p106, %p107
    %s109 = ssub.s32 %s19, %s31
    %s110 = ssub.s32 %s20, %s27
    %s111 = sor.u32 %s109, %s110
    %p112 = scmp.eq.s32.totalorder %s111, 0
    %s114 = sadd.s32 %s113, 1
    %s115 = scalar_select %p112, %s113, %s114
    %p118 = pneg %p112
    %p119 = scmp.eq.s32.totalorder %s12, 1
    %p120 = por %p118, %p119
    %p121 = scmp.ne.s32.totalorder %s113, %s116
    %p122 = scmp.eq.s32.totalorder %s12, 0
    %p123 = por %p121, %p122
    %p124 = scmp.ne.s32.totalorder %s113, %s116
    %p125 = scmp.eq.s32.totalorder %s17, 1
    %p126 = por %p124, %p125
    %p127 = scmp.ne.s32.totalorder %s116, %s117
    %p128 = scmp.eq.s32.totalorder %s17, 0
    %p129 = por %p127, %p128
    %p130 = scmp.ne.s32.totalorder %s116, %s117
    %p131 = scmp.eq.s32.totalorder %s18, 1
    %p132 = por %p130, %p131
    %p134 = scmp.ne.s32.totalorder %s117, %s133
    %p135 = scmp.eq.s32.totalorder %s18, 0
    %p136 = por %p134, %p135
    %s137 = ssub.s32 %s19, %s31
    %s138 = ssub.s32 %s20, %s27
    %s139 = sor.u32 %s137, %s138
    %p140 = scmp.eq.s32.totalorder %s139, 0
    %s142 = sadd.s32 %s141, 1
    %s143 = scalar_select %p140, %s141, %s142
    %p146 = pneg %p140
    %p147 = scmp.eq.s32.totalorder %s12, 1
    %p148 = por %p146, %p147
    %p149 = scmp.ne.s32.totalorder %s141, %s144
    %p150 = scmp.eq.s32.totalorder %s12, 0
    %p151 = por %p149, %p150
    %p152 = scmp.ne.s32.totalorder %s141, %s144
    %p153 = scmp.eq.s32.totalorder %s17, 1
    %p154 = por %p152, %p153
    %p155 = scmp.ne.s32.totalorder %s144, %s145
    %p156 = scmp.eq.s32.totalorder %s17, 0
    %p157 = por %p155, %p156
    %p158 = scmp.ne.s32.totalorder %s144, %s145
    %p159 = scmp.eq.s32.totalorder %s18, 1
    %p160 = por %p158, %p159
    %p162 = scmp.ne.s32.totalorder %s145, %s161
    %p163 = scmp.eq.s32.totalorder %s18, 0
    %p164 = por %p162, %p163
    %s165 = ssub.s32 %s19, %s31
    %s166 = ssub.s32 %s20, %s27
    %s167 = sor.u32 %s165, %s166
    %p168 = scmp.eq.s32.totalorder %s167, 0
    %s170 = sadd.s32 %s169, 1
    %s171 = scalar_select %p168, %s169, %s170
    %p174 = pneg %p168
    %p175 = scmp.eq.s32.totalorder %s12, 1
    %p176 = por %p174, %p175
    %p177 = scmp.ne.s32.totalorder %s169, %s172
    %p178 = scmp.eq.s32.totalorder %s12, 0
    %p179 = por %p177, %p178
    %p180 = scmp.ne.s32.totalorder %s169, %s172
    %p181 = scmp.eq.s32.totalorder %s17, 1
    %p182 = por %p180, %p181
    %p183 = scmp.ne.s32.totalorder %s172, %s173
    %p184 = scmp.eq.s32.totalorder %s17, 0
    %p185 = por %p183, %p184
    %p186 = scmp.ne.s32.totalorder %s172, %s173
    %p187 = scmp.eq.s32.totalorder %s18, 1
    %p188 = por %p186, %p187
    %p190 = scmp.ne.s32.totalorder %s173, %s189
    %p191 = scmp.eq.s32.totalorder %s18, 0
    %p192 = por %p190, %p191
    %p193 = scmp.le.s32.totalorder 1, %s12
    %p194 = scmp.lt.s32.totalorder %s12, 3
    %p195 = pnand %p193, %p194
    %p196 = pneg %p195
    // Predicated region
    $region9: #{tpu_custom_call.1} parent=5 // pred_check
      _
    $region10: #{tpu_custom_call.1} parent=5 // pred_check_branch
      %198 = sbr.rel (%p195) target = $region12
    $region11: #{tpu_custom_call.1} parent=5 // pred_region
      %s199 = ssub.s32 %s12, 1
      // Predicated region
      $region13: #{tpu_custom_call.1} parent=11 // pred_check
        %p200 = pneg %p45
      $region14: #{tpu_custom_call.1} parent=11 // pred_check_branch
        %202 = sbr.rel (%p200) target = $region16
      $region15: #{tpu_custom_call.1} parent=11 // pred_region
        _
      $region16: #{tpu_custom_call.1} parent=11 // pred_fallthru
        _
    $region12: #{tpu_custom_call.1} parent=5 // pred_fallthru
      _
    %p203 = scmp.lt.s32.totalorder %s12, 2
    // Predicated region
    $region17: #{tpu_custom_call.1} parent=5 // pred_check
      %p204 = pneg %p203
    $region18: #{tpu_custom_call.1} parent=5 // pred_check_branch
      %206 = sbr.rel (%p204) target = $region20
    $region19: #{tpu_custom_call.1} parent=5 // pred_region
      // Predicated region
      $region21: #{tpu_custom_call.1} parent=19 // pred_check
        %p207 = pneg %p67
      $region22: #{tpu_custom_call.1} parent=19 // pred_check_branch
        %209 = sbr.rel (%p207) target = $region24
      $region23: #{tpu_custom_call.1} parent=19 // pred_region
        %p210 = scmp.lt.s32.totalorder %s19, 1
        %s211 = scalar_select %p210, %s19, 1
        %p212 = scmp.lt.s32.totalorder %s20, 0
        %s213 = scalar_select %p212, %s20, 0
        %s214 = smul.addr %s211, 2
        %s215 = sadd.s32 %s213, %s214
        %s216 = smul.addr %s215, 8
        %s217 = scalar_lea.vmem %s1, %s216
      $region24: #{tpu_custom_call.1} parent=19 // pred_fallthru
        _
    $region20: #{tpu_custom_call.1} parent=5 // pred_fallthru
      _
    %p218 = scmp.le.s32.totalorder 1, %s12
    %p219 = scmp.lt.s32.totalorder %s12, 3
    %p220 = pnand %p218, %p219
    %p221 = pneg %p220
    // Predicated region
    $region25: #{tpu_custom_call.1} parent=5 // pred_check
      _
    $region26: #{tpu_custom_call.1} parent=5 // pred_check_branch
      %223 = sbr.rel (%p220) target = $region28
    $region27: #{tpu_custom_call.1} parent=5 // pred_region
      %s224 = ssub.s32 %s12, 1
      %p225 = pneg %p45
      %p226 = pneg %p42
      %p227 = scmp.lt.s32.totalorder %s21, 1
      %s228 = scalar_select %p227, %s21, 1
      %p229 = scmp.lt.s32.totalorder %s22, 0
      %s230 = scalar_select %p229, %s22, 0
      %s231 = smul.addr %s228, 2
      %s232 = sadd.s32 %s230, %s231
      %s233 = smul.addr %s232, 8
      %s234 = scalar_lea.vmem %s1, %s233
      %p235 = pneg %p73
      %p236 = pneg %p70
      %p237 = pneg %p101
      %p238 = pneg %p98
      %p239 = scmp.lt.s32.totalorder %s21, 1
      %s240 = scalar_select %p239, %s21, 1
      %p241 = scmp.lt.s32.totalorder %s22, 0
      %s242 = scalar_select %p241, %s22, 0
      %s243 = smul.addr %s240, 2
      %s244 = sadd.s32 %s242, %s243
      %s245 = smul.addr %s244, 8
      %s246 = scalar_lea.vmem %s2, %s245
      %p247 = pneg %p129
      %p248 = pneg %p126
      %p249 = scmp.lt.s32.totalorder %s21, 1
      %s250 = scalar_select %p249, %s21, 1
      %p251 = scmp.lt.s32.totalorder %s22, 0
      %s252 = scalar_select %p251, %s22, 0
      %s253 = smul.addr %s250, 2
      %s254 = sadd.s32 %s252, %s253
      %s255 = smul.addr %s254, 8
      %s256 = scalar_lea.vmem %s3, %s255
      %p257 = pneg %p157
      %p258 = pneg %p154
      %p259 = scmp.lt.s32.totalorder %s21, 1
      %s260 = scalar_select %p259, %s21, 1
      %p261 = scmp.lt.s32.totalorder %s22, 0
      %s262 = scalar_select %p261, %s22, 0
      %s263 = smul.addr %s260, 2
      %s264 = sadd.s32 %s262, %s263
      %s265 = smul.addr %s264, 8
      %s266 = scalar_lea.vmem %s4, %s265
      %p267 = pneg %p185
      %p268 = pneg %p182
      %p269 = scmp.lt.s32.totalorder %s21, 1
      %s270 = scalar_select %p269, %s21, 1
      %p271 = scmp.lt.s32.totalorder %s22, 0
      %s272 = scalar_select %p271, %s22, 0
      %s273 = smul.addr %s270, 2
      %s274 = sadd.s32 %s272, %s273
      %s275 = smul.addr %s274, 8
      %s276 = scalar_lea.vmem %s5, %s275
      %p277 = scmp.lt.s32.totalorder %s21, 1
      %s278 = scalar_select %p277, %s21, 1
      %p279 = scmp.lt.s32.totalorder %s22, 0
      %s280 = scalar_select %p279, %s22, 0
      %s281 = smul.addr %s278, 2
      %s282 = sadd.s32 %s280, %s281
      %s283 = smul.addr %s282, 8
      %s284 = scalar_lea.vmem %s1, %s283
      %p285 = scmp.lt.s32.totalorder %s21, 1
      %s286 = scalar_select %p285, %s21, 1
      %p287 = scmp.lt.s32.totalorder %s22, 0
      %s288 = scalar_select %p287, %s22, 0
      %s289 = smul.addr %s286, 2
      %s290 = sadd.s32 %s288, %s289
      %s291 = smul.addr %s290, 8
      %s292 = scalar_lea.vmem %s2, %s291
      %p293 = scmp.lt.s32.totalorder %s21, 1
      %s294 = scalar_select %p293, %s21, 1
      %p295 = scmp.lt.s32.totalorder %s22, 0
      %s296 = scalar_select %p295, %s22, 0
      %s297 = smul.addr %s294, 2
      %s298 = sadd.s32 %s296, %s297
      %s299 = smul.addr %s298, 8
      %s300 = scalar_lea.vmem %s3, %s299
      %p301 = scmp.lt.s32.totalorder %s21, 1
      %s302 = scalar_select %p301, %s21, 1
      %p303 = scmp.lt.s32.totalorder %s22, 0
      %s304 = scalar_select %p303, %s22, 0
      %s305 = smul.addr %s302, 2
      %s306 = sadd.s32 %s304, %s305
      %s307 = smul.addr %s306, 8
      %s308 = scalar_lea.vmem %s4, %s307
      %p309 = scmp.lt.s32.totalorder %s21, 1
      %s310 = scalar_select %p309, %s21, 1
      %p311 = scmp.lt.s32.totalorder %s22, 0
      %s312 = scalar_select %p311, %s22, 0
      %s313 = smul.addr %s310, 2
      %s314 = sadd.s32 %s312, %s313
      %s315 = smul.addr %s314, 8
      %s316 = scalar_lea.vmem %s5, %s315
      %v317 = vld [vmem:[%s284] sm:$0xff]
      %v318 = vld [vmem:[%s284 + $0x8] sm:$0xff]
      %v319 = vld [vmem:[%s0] sm:$0xff]
      %v320 = vld [vmem:[%s0 + $0x8] sm:$0xff]
      %vm321 = vcmask 130048
      %v323 = vsel %vm321, %v319, 0
      %v326 = vsel %vm321, %v320, 0
      %328 = vmatprep.subr.mxu0 0.0
      %329 = vmatpush1.msra.mxu0 %v317
      %330 = vmatprep.subr.mxu0 0.0
      %331 = vmatpush1.msra.mxu0 %v318
      %332 = vmatprep.subr.mxu0 0.0
      %333 = vmatpush1.msra.mxu0 0.0
      %334 = vmatprep.subr.mxu0 0.0
      %335 = vmatpush1.msra.mxu0 0.0
      %336 = vmatprep.subr.mxu0 0.0
      %337 = vmatpush1.msra.mxu0 0.0
      %338 = vmatprep.subr.mxu0 0.0
      %339 = vmatpush1.msra.mxu0 0.0
      %340 = vmatprep.subr.mxu0 0.0
      %341 = vmatpush1.msra.mxu0 0.0
      %342 = vmatprep.subr.mxu0 0.0
      %343 = vmatpush1.msra.mxu0 0.0
      %344 = vmatprep.subr.mxu0 0.0
      %345 = vmatpush1.msra.mxu0 0.0
      %346 = vmatprep.subr.mxu0 0.0
      %347 = vmatpush1.msra.mxu0 0.0
      %348 = vmatprep.subr.mxu0 0.0
      %349 = vmatpush1.msra.mxu0 0.0
      %350 = vmatprep.subr.mxu0 0.0
      %351 = vmatpush1.msra.mxu0 0.0
      %352 = vmatprep.subr.mxu0 0.0
      %353 = vmatpush1.msra.mxu0 0.0
      %354 = vmatprep.subr.mxu0 0.0
      %355 = vmatpush1.msra.mxu0 0.0
      %356 = vmatprep.subr.mxu0 0.0
      %357 = vmatpush1.msra.mxu0 0.0
      %358 = vmatprep.subr.mxu0 0.0
      %359 = vmatpush1.msra.mxu0 0.0
      %360 = vmatprep.subr.mxu0 0.0
      %361 = vmatpush1.msra.mxu0 0.0
      %362 = vmatprep.subr.mxu0 0.0
      %363 = vmatpush1.msra.mxu0 0.0
      %364 = vmatprep.subr.mxu0 0.0
      %365 = vmatpush1.msra.mxu0 0.0
      %366 = vmatprep.subr.mxu0 0.0
      %367 = vmatpush1.msra.mxu0 0.0
      %368 = vmatprep.subr.mxu0 0.0
      %369 = vmatpush1.msra.mxu0 0.0
      %370 = vmatprep.subr.mxu0 0.0
      %371 = vmatpush1.msra.mxu0 0.0
      %372 = vmatprep.subr.mxu0 0.0
      %373 = vmatpush1.msra.mxu0 0.0
      %374 = vmatprep.subr.mxu0 0.0
      %375 = vmatpush1.msra.mxu0 0.0
      %376 = vmatprep.subr.mxu0 0.0
      %377 = vmatpush1.msra.mxu0 0.0
      %378 = vmatprep.subr.mxu0 0.0
      %379 = vmatpush1.msra.mxu0 0.0
      %380 = vmatprep.subr.mxu0 0.0
      %381 = vmatpush1.msra.mxu0 0.0
      %382 = vmatprep.subr.mxu0 0.0
      %383 = vmatpush1.msra.mxu0 0.0
      %384 = vmatprep.subr.mxu0 0.0
      %385 = vmatpush1.msra.mxu0 0.0
      %386 = vmatprep.subr.mxu0 0.0
      %387 = vmatpush1.msra.mxu0 0.0
      %388 = vmatprep.subr.mxu0 0.0
      %389 = vmatpush1.msra.mxu0 0.0
      %390 = vmatprep.subr.mxu0 0.0
      %391 = vmatpush1.msra.mxu0 0.0
      %392 = vmatprep.mubr.f32.mxu0 0.0
      %393 = vmatmul.mubr.f32.gmra.mrb[0].mxu0 %v323
      %v394 = vpop.f32.mrb[0].mxu0
      %v395 = vadd.f32 0.0, %v394
      %v396 = vpop.f32.mrb[0].mxu0
      %397 = vmatprep.mubr.f32.mxu0 0.0
      %398 = vmatmul.mubr.f32.gmra.mrb[0].mxu0 %v326
      %v399 = vpop.f32.mrb[0].mxu0
      %v400 = vadd.f32 0.0, %v399
      %v401 = vpop.f32.mrb[0].mxu0
      %402 = vdwg.mxu0
      %vm403 = vcmask 64512
      %404 = vst.msk [vmem:[%s292] sm:$0xff] %vm403, %v395
      %405 = vst.msk [vmem:[%s292 + $0x8] sm:$0xff] %vm403, %v400
      %v406 = vsub.f32 %v317, %v395
      %v407 = vsub.f32 %v318, %v400
      %s408 = scalar_lea.vmem %s0, 16
      %v409 = vld [vmem:[%s408] sm:$0xff]
      %v410 = vld [vmem:[%s408 + $0x8] sm:$0xff]
      %v412 = vsel %vm321, %v409, 0
      %v415 = vsel %vm321, %v410, 0
      %417 = vmatprep.subr.mxu0 0.0
      %418 = vmatpush1.msra.mxu0 %v406
      %419 = vmatprep.subr.mxu0 0.0
      %420 = vmatpush1.msra.mxu0 %v407
      %421 = vmatprep.subr.mxu0 0.0
      %422 = vmatpush1.msra.mxu0 0.0
      %423 = vmatprep.subr.mxu0 0.0
      %424 = vmatpush1.msra.mxu0 0.0
      %425 = vmatprep.subr.mxu0 0.0
      %426 = vmatpush1.msra.mxu0 0.0
      %427 = vmatprep.subr.mxu0 0.0
      %428 = vmatpush1.msra.mxu0 0.0
      %429 = vmatprep.subr.mxu0 0.0
      %430 = vmatpush1.msra.mxu0 0.0
      %431 = vmatprep.subr.mxu0 0.0
      %432 = vmatpush1.msra.mxu0 0.0
      %433 = vmatprep.subr.mxu0 0.0
      %434 = vmatpush1.msra.mxu0 0.0
      %435 = vmatprep.subr.mxu0 0.0
      %436 = vmatpush1.msra.mxu0 0.0
      %437 = vmatprep.subr.mxu0 0.0
      %438 = vmatpush1.msra.mxu0 0.0
      %439 = vmatprep.subr.mxu0 0.0
      %440 = vmatpush1.msra.mxu0 0.0
      %441 = vmatprep.subr.mxu0 0.0
      %442 = vmatpush1.msra.mxu0 0.0
      %443 = vmatprep.subr.mxu0 0.0
      %444 = vmatpush1.msra.mxu0 0.0
      %445 = vmatprep.subr.mxu0 0.0
      %446 = vmatpush1.msra.mxu0 0.0
      %447 = vmatprep.subr.mxu0 0.0
      %448 = vmatpush1.msra.mxu0 0.0
      %449 = vmatprep.subr.mxu0 0.0
      %450 = vmatpush1.msra.mxu0 0.0
      %451 = vmatprep.subr.mxu0 0.0
      %452 = vmatpush1.msra.mxu0 0.0
      %453 = vmatprep.subr.mxu0 0.0
      %454 = vmatpush1.msra.mxu0 0.0
      %455 = vmatprep.subr.mxu0 0.0
      %456 = vmatpush1.msra.mxu0 0.0
      %457 = vmatprep.subr.mxu0 0.0
      %458 = vmatpush1.msra.mxu0 0.0
      %459 = vmatprep.subr.mxu0 0.0
      %460 = vmatpush1.msra.mxu0 0.0
      %461 = vmatprep.subr.mxu0 0.0
      %462 = vmatpush1.msra.mxu0 0.0
      %463 = vmatprep.subr.mxu0 0.0
      %464 = vmatpush1.msra.mxu0 0.0
      %465 = vmatprep.subr.mxu0 0.0
      %466 = vmatpush1.msra.mxu0 0.0
      %467 = vmatprep.subr.mxu0 0.0
      %468 = vmatpush1.msra.mxu0 0.0
      %469 = vmatprep.subr.mxu0 0.0
      %470 = vmatpush1.msra.mxu0 0.0
      %471 = vmatprep.subr.mxu0 0.0
      %472 = vmatpush1.msra.mxu0 0.0
      %473 = vmatprep.subr.mxu0 0.0
      %474 = vmatpush1.msra.mxu0 0.0
      %475 = vmatprep.subr.mxu0 0.0
      %476 = vmatpush1.msra.mxu0 0.0
      %477 = vmatprep.subr.mxu0 0.0
      %478 = vmatpush1.msra.mxu0 0.0
      %479 = vmatprep.subr.mxu0 0.0
      %480 = vmatpush1.msra.mxu0 0.0
      %481 = vmatprep.mubr.f32.mxu0 0.0
      %482 = vmatmul.mubr.f32.gmra.mrb[0].mxu0 %v412
      %v483 = vpop.f32.mrb[0].mxu0
      %v484 = vadd.f32 0.0, %v483
      %v485 = vpop.f32.mrb[0].mxu0
      %486 = vmatprep.mubr.f32.mxu0 0.0
      %487 = vmatmul.mubr.f32.gmra.mrb[0].mxu0 %v415
      %v488 = vpop.f32.mrb[0].mxu0
      %v489 = vadd.f32 0.0, %v488
      %v490 = vpop.f32.mrb[0].mxu0
      %491 = vdwg.mxu0
      %492 = vst.msk [vmem:[%s300] sm:$0xff] %vm403, %v484
      %493 = vst.msk [vmem:[%s300 + $0x8] sm:$0xff] %vm403, %v489
      %v494 = vsub.f32 %v406, %v484
      %v495 = vsub.f32 %v407, %v489
      %s496 = scalar_lea.vmem %s0, 32
      %v497 = vld [vmem:[%s496] sm:$0xff]
      %v498 = vld [vmem:[%s496 + $0x8] sm:$0xff]
      %v500 = vsel %vm321, %v497, 0
      %v503 = vsel %vm321, %v498, 0
      %505 = vmatprep.subr.mxu0 0.0
      %506 = vmatpush1.msra.mxu0 %v494
      %507 = vmatprep.subr.mxu0 0.0
      %508 = vmatpush1.msra.mxu0 %v495
      %509 = vmatprep.subr.mxu0 0.0
      %510 = vmatpush1.msra.mxu0 0.0
      %511 = vmatprep.subr.mxu0 0.0
      %512 = vmatpush1.msra.mxu0 0.0
      %513 = vmatprep.subr.mxu0 0.0
      %514 = vmatpush1.msra.mxu0 0.0
      %515 = vmatprep.subr.mxu0 0.0
      %516 = vmatpush1.msra.mxu0 0.0
      %517 = vmatprep.subr.mxu0 0.0
      %518 = vmatpush1.msra.mxu0 0.0
      %519 = vmatprep.subr.mxu0 0.0
      %520 = vmatpush1.msra.mxu0 0.0
      %521 = vmatprep.subr.mxu0 0.0
      %522 = vmatpush1.msra.mxu0 0.0
      %523 = vmatprep.subr.mxu0 0.0
      %524 = vmatpush1.msra.mxu0 0.0
      %525 = vmatprep.subr.mxu0 0.0
      %526 = vmatpush1.msra.mxu0 0.0
      %527 = vmatprep.subr.mxu0 0.0
      %528 = vmatpush1.msra.mxu0 0.0
      %529 = vmatprep.subr.mxu0 0.0
      %530 = vmatpush1.msra.mxu0 0.0
      %531 = vmatprep.subr.mxu0 0.0
      %532 = vmatpush1.msra.mxu0 0.0
      %533 = vmatprep.subr.mxu0 0.0
      %534 = vmatpush1.msra.mxu0 0.0
      %535 = vmatprep.subr.mxu0 0.0
      %536 = vmatpush1.msra.mxu0 0.0
      %537 = vmatprep.subr.mxu0 0.0
      %538 = vmatpush1.msra.mxu0 0.0
      %539 = vmatprep.subr.mxu0 0.0
      %540 = vmatpush1.msra.mxu0 0.0
      %541 = vmatprep.subr.mxu0 0.0
      %542 = vmatpush1.msra.mxu0 0.0
      %543 = vmatprep.subr.mxu0 0.0
      %544 = vmatpush1.msra.mxu0 0.0
      %545 = vmatprep.subr.mxu0 0.0
      %546 = vmatpush1.msra.mxu0 0.0
      %547 = vmatprep.subr.mxu0 0.0
      %548 = vmatpush1.msra.mxu0 0.0
      %549 = vmatprep.subr.mxu0 0.0
      %550 = vmatpush1.msra.mxu0 0.0
      %551 = vmatprep.subr.mxu0 0.0
      %552 = vmatpush1.msra.mxu0 0.0
      %553 = vmatprep.subr.mxu0 0.0
      %554 = vmatpush1.msra.mxu0 0.0
      %555 = vmatprep.subr.mxu0 0.0
      %556 = vmatpush1.msra.mxu0 0.0
      %557 = vmatprep.subr.mxu0 0.0
      %558 = vmatpush1.msra.mxu0 0.0
      %559 = vmatprep.subr.mxu0 0.0
      %560 = vmatpush1.msra.mxu0 0.0
      %561 = vmatprep.subr.mxu0 0.0
      %562 = vmatpush1.msra.mxu0 0.0
      %563 = vmatprep.subr.mxu0 0.0
      %564 = vmatpush1.msra.mxu0 0.0
      %565 = vmatprep.subr.mxu0 0.0
      %566 = vmatpush1.msra.mxu0 0.0
      %567 = vmatprep.subr.mxu0 0.0
      %568 = vmatpush1.msra.mxu0 0.0
      %569 = vmatprep.mubr.f32.mxu0 0.0
      %570 = vmatmul.mubr.f32.gmra.mrb[0].mxu0 %v500
      %v571 = vpop.f32.mrb[0].mxu0
      %v572 = vadd.f32 0.0, %v571
      %v573 = vpop.f32.mrb[0].mxu0
      %574 = vmatprep.mubr.f32.mxu0 0.0
      %575 = vmatmul.mubr.f32.gmra.mrb[0].mxu0 %v503
      %v576 = vpop.f32.mrb[0].mxu0
      %v577 = vadd.f32 0.0, %v576
      %v578 = vpop.f32.mrb[0].mxu0
      %579 = vdwg.mxu0
      %580 = vst.msk [vmem:[%s308] sm:$0xff] %vm403, %v572
      %581 = vst.msk [vmem:[%s308 + $0x8] sm:$0xff] %vm403, %v577
      %v582 = vsub.f32 %v494, %v572
      %v583 = vsub.f32 %v495, %v577
      %584 = vst.msk [vmem:[%s316] sm:$0xff] %vm403, %v582
      %585 = vst.msk [vmem:[%s316 + $0x8] sm:$0xff] %vm403, %v583
      %p586 = scmp.lt.s32.totalorder %s21, 1
      %s587 = scalar_select %p586, %s21, 1
      %p588 = scmp.lt.s32.totalorder %s22, 0
      %s589 = scalar_select %p588, %s22, 0
      %s590 = smul.addr %s587, 2
      %s591 = sadd.s32 %s589, %s590
      %s592 = smul.addr %s591, 8
      %s593 = scalar_lea.vmem %s2, %s592
      %p594 = scmp.lt.s32.totalorder %s21, 1
      %s595 = scalar_select %p594, %s21, 1
      %p596 = scmp.lt.s32.totalorder %s22, 0
      %s597 = scalar_select %p596, %s22, 0
      %s598 = smul.addr %s595, 2
      %s599 = sadd.s32 %s597, %s598
      %s600 = smul.addr %s599, 8
      %s601 = scalar_lea.vmem %s3, %s600
      %p602 = scmp.lt.s32.totalorder %s21, 1
      %s603 = scalar_select %p602, %s21, 1
      %p604 = scmp.lt.s32.totalorder %s22, 0
      %s605 = scalar_select %p604, %s22, 0
      %s606 = smul.addr %s603, 2
      %s607 = sadd.s32 %s605, %s606
      %s608 = smul.addr %s607, 8
      %s609 = scalar_lea.vmem %s4, %s608
      %p610 = scmp.lt.s32.totalorder %s21, 1
      %s611 = scalar_select %p610, %s21, 1
      %p612 = scmp.lt.s32.totalorder %s22, 0
      %s613 = scalar_select %p612, %s22, 0
      %s614 = smul.addr %s611, 2
      %s615 = sadd.s32 %s613, %s614
      %s616 = smul.addr %s615, 8
      %s617 = scalar_lea.vmem %s5, %s616
      // Predicated region
      $region29: #{tpu_custom_call.1} parent=27 // pred_check
        %p618 = pneg %p98
      $region30: #{tpu_custom_call.1} parent=27 // pred_check_branch
        %620 = sbr.rel (%p618) target = $region32
      $region31: #{tpu_custom_call.1} parent=27 // pred_region
        _
      $region32: #{tpu_custom_call.1} parent=27 // pred_fallthru
        _
      // Predicated region
      $region33: #{tpu_custom_call.1} parent=27 // pred_check
        %p621 = pneg %p126
      $region34: #{tpu_custom_call.1} parent=27 // pred_check_branch
        %623 = sbr.rel (%p621) target = $region36
      $region35: #{tpu_custom_call.1} parent=27 // pred_region
        _
      $region36: #{tpu_custom_call.1} parent=27 // pred_fallthru
        _
      // Predicated region
      $region37: #{tpu_custom_call.1} parent=27 // pred_check
        %p624 = pneg %p154
      $region38: #{tpu_custom_call.1} parent=27 // pred_check_branch
        %626 = sbr.rel (%p624) target = $region40
      $region39: #{tpu_custom_call.1} parent=27 // pred_region
        _
      $region40: #{tpu_custom_call.1} parent=27 // pred_fallthru
        _
      // Predicated region
      $region41: #{tpu_custom_call.1} parent=27 // pred_check
        %p627 = pneg %p182
      $region42: #{tpu_custom_call.1} parent=27 // pred_check_branch
        %629 = sbr.rel (%p627) target = $region44
      $region43: #{tpu_custom_call.1} parent=27 // pred_region
        _
      $region44: #{tpu_custom_call.1} parent=27 // pred_fallthru
        _
    $region28: #{tpu_custom_call.1} parent=5 // pred_fallthru
      _
    %p630 = scmp.le.s32.totalorder 2, %s12
    // Predicated region
    $region45: #{tpu_custom_call.1} parent=5 // pred_check
      %p631 = pneg %p630
    $region46: #{tpu_custom_call.1} parent=5 // pred_check_branch
      %633 = sbr.rel (%p631) target = $region48
    $region47: #{tpu_custom_call.1} parent=5 // pred_region
      %s634 = ssub.s32 %s12, 2
      // Predicated region
      $region49: #{tpu_custom_call.1} parent=47 // pred_check
        %p635 = pneg %p104
      $region50: #{tpu_custom_call.1} parent=47 // pred_check_branch
        %637 = sbr.rel (%p635) target = $region52
      $region51: #{tpu_custom_call.1} parent=47 // pred_region
        %p638 = scmp.lt.s32.totalorder %s23, 1
        %s639 = scalar_select %p638, %s23, 1
        %p640 = scmp.lt.s32.totalorder %s24, 0
        %s641 = scalar_select %p640, %s24, 0
        %s642 = smul.addr %s639, 2
        %s643 = sadd.s32 %s641, %s642
        %s644 = smul.addr %s643, 8
        %s645 = scalar_lea.vmem %s2, %s644
      $region52: #{tpu_custom_call.1} parent=47 // pred_fallthru
        _
      // Predicated region
      $region53: #{tpu_custom_call.1} parent=47 // pred_check
        %p646 = pneg %p132
      $region54: #{tpu_custom_call.1} parent=47 // pred_check_branch
        %648 = sbr.rel (%p646) target = $region56
      $region55: #{tpu_custom_call.1} parent=47 // pred_region
        %p649 = scmp.lt.s32.totalorder %s23, 1
        %s650 = scalar_select %p649, %s23, 1
        %p651 = scmp.lt.s32.totalorder %s24, 0
        %s652 = scalar_select %p651, %s24, 0
        %s653 = smul.addr %s650, 2
        %s654 = sadd.s32 %s652, %s653
        %s655 = smul.addr %s654, 8
        %s656 = scalar_lea.vmem %s3, %s655
      $region56: #{tpu_custom_call.1} parent=47 // pred_fallthru
        _
      // Predicated region
      $region57: #{tpu_custom_call.1} parent=47 // pred_check
        %p657 = pneg %p160
      $region58: #{tpu_custom_call.1} parent=47 // pred_check_branch
        %659 = sbr.rel (%p657) target = $region60
      $region59: #{tpu_custom_call.1} parent=47 // pred_region
        %p660 = scmp.lt.s32.totalorder %s23, 1
        %s661 = scalar_select %p660, %s23, 1
        %p662 = scmp.lt.s32.totalorder %s24, 0
        %s663 = scalar_select %p662, %s24, 0
        %s664 = smul.addr %s661, 2
        %s665 = sadd.s32 %s663, %s664
        %s666 = smul.addr %s665, 8
        %s667 = scalar_lea.vmem %s4, %s666
      $region60: #{tpu_custom_call.1} parent=47 // pred_fallthru
        _
      // Predicated region
      $region61: #{tpu_custom_call.1} parent=47 // pred_check
        %p668 = pneg %p188
      $region62: #{tpu_custom_call.1} parent=47 // pred_check_branch
        %670 = sbr.rel (%p668) target = $region64
      $region63: #{tpu_custom_call.1} parent=47 // pred_region
        %p671 = scmp.lt.s32.totalorder %s23, 1
        %s672 = scalar_select %p671, %s23, 1
        %p673 = scmp.lt.s32.totalorder %s24, 0
        %s674 = scalar_select %p673, %s24, 0
        %s675 = smul.addr %s672, 2
        %s676 = sadd.s32 %s674, %s675
        %s677 = smul.addr %s676, 8
        %s678 = scalar_lea.vmem %s5, %s677
      $region64: #{tpu_custom_call.1} parent=47 // pred_fallthru
        _
    $region48: #{tpu_custom_call.1} parent=5 // pred_fallthru
      _
  $region6: #{tpu_custom_call.1} parent=0 // loop_footer
    %s16 = sadd.s32 1, %s12
  $region7: #{tpu_custom_call.1} parent=0 // loop_footer_branch
    %11 = sbr.rel target = $region3
  $region8: #{tpu_custom_call.1} parent=0 // loop_exit
    _

</llo_original>
